<compile_context>
chip_gen: v7x
topology: tpu7x:2x2x1
jax: 0.10.0
libtpu: 0.0.40
codegen_flags: <defaults>
</compile_context>

<pallas_src>
import jax
import jax.numpy as jnp
from jax.experimental import pallas as pl
from jax.experimental.pallas import tpu as pltpu

INPUT_SZ = 32 * 32 * 3  # forward() hard-codes the (N, 3072) flatten


def mlp_kernel(x_ref,
               w1_ref, b1_ref,
               w2_ref, b2_ref,
               w3_ref, b3_ref,
               w4_ref, b4_ref,
               o_ref):
    """(Linear -> ReLU) x3 -> Linear on one (TB, 3072) batch tile.

    bf16 inputs/weights, f32 MXU accumulation; ReLU + bias in f32, then a
    single downcast per layer (keeps v5e's f32-only VPU happy)."""
    x = x_ref[...]                                                 # (TB, 3072) bf16

    h = jnp.dot(x, w1_ref[...], preferred_element_type=jnp.float32) + b1_ref[...]
    h = jnp.maximum(h, 0.0).astype(jnp.bfloat16)                   # (TB, 2*hidden)

    h = jnp.dot(h, w2_ref[...], preferred_element_type=jnp.float32) + b2_ref[...]
    h = jnp.maximum(h, 0.0).astype(jnp.bfloat16)                   # (TB, hidden)

    h = jnp.dot(h, w3_ref[...], preferred_element_type=jnp.float32) + b3_ref[...]
    h = jnp.maximum(h, 0.0).astype(jnp.bfloat16)                   # (TB, hidden//2)

    out = jnp.dot(h, w4_ref[...], preferred_element_type=jnp.float32) + b4_ref[...]
    o_ref[...] = out.astype(o_ref.dtype)                           # (TB, n_classes)


def base_model_forward(x_nchw, params, *, tb_max=256):
    """Equivalent of BaseModel.forward: view(-1, 3072) then the MLP."""
    n = x_nchw.shape[0]
    x2d = x_nchw.reshape(n, INPUT_SZ).astype(jnp.bfloat16)         # glue reshape in JAX

    (w1, b1), (w2, b2), (w3, b3), (w4, b4) = params
    n_classes = w4.shape[1]

    # Batch tile: multiple of 16 (bf16 sublane packing), capped at tb_max.
    # Pad the batch to a multiple of TB; padded rows are dead compute only.
    tb = min(tb_max, max(16, ((n + 15) // 16) * 16))
    n_pad = ((n + tb - 1) // tb) * tb
    if n_pad != n:
        x2d = jnp.pad(x2d, ((0, n_pad - n), (0, 0)))

    grid = (n_pad // tb,)

    x_spec = pl.BlockSpec((tb, INPUT_SZ), lambda i: (i, 0))
    # Weights/biases: full-array blocks, constant index_map -> loaded once,
    # held resident in VMEM across all batch tiles.
    resident = lambda a: pl.BlockSpec(a.shape, lambda i: (0, 0))
    # NOTE: n_classes=10 (<128) means masked partial stores; negligible here.
    out_spec = pl.BlockSpec((tb, n_classes), lambda i: (i, 0))

    out = pl.pallas_call(
        mlp_kernel,
        out_shape=jax.ShapeDtypeStruct((n_pad, n_classes), jnp.float32),
        grid=grid,
        in_specs=[
            x_spec,
            resident(w1), resident(b1),
            resident(w2), resident(b2),
            resident(w3), resident(b3),
            resident(w4), resident(b4),
        ],
        out_specs=out_spec,
        compiler_params=pltpu.CompilerParams(
            dimension_semantics=("parallel",),   # v7x dual-TC batch sharding
        ),
    )(x2d, w1, b1, w2, b2, w3, b3, w4, b4)

    return out[:n]


def init_params(key, input_sz, hidden_dim, n_classes):
    """Mirror nn.Linear default init (uniform +/- 1/sqrt(fan_in)).
    Weights stored (in, out) in bf16 so the kernel does x @ W (== PyTorch
    x @ W.T); biases kept f32 to add directly onto the f32 accumulator."""
    dims = [input_sz, hidden_dim * 2, hidden_dim, hidden_dim // 2, n_classes]
    params = []
    for i in range(4):
        fan_in, fan_out = dims[i], dims[i + 1]
        key, kw, kb = jax.random.split(key, 3)
        bound = 1.0 / (fan_in ** 0.5)
        w = jax.random.uniform(kw, (fan_in, fan_out), jnp.float32, -bound, bound)
        b = jax.random.uniform(kb, (1, fan_out), jnp.float32, -bound, bound)
        params.append((w.astype(jnp.bfloat16), b))
    return params


if __name__ == "__main__":
    HIDDEN = 32
    N_CLASSES = 10
    BATCH = 2

    key = jax.random.PRNGKey(0)
    key, kx = jax.random.split(key)
    x = jax.random.normal(kx, (BATCH, 3, 32, 32), dtype=jnp.float32)   # NCHW

    params = init_params(key, INPUT_SZ, HIDDEN, N_CLASSES)

    out = base_model_forward(x, params)
    out = jax.block_until_ready(out)

    # Reference in plain JAX with the same bf16-weight / f32-accumulate recipe.
    def ref(x_nchw):
        h = x_nchw.reshape(x_nchw.shape[0], -1).astype(jnp.bfloat16)
        for i, (w, b) in enumerate(params):
            h = jnp.dot(h, w, preferred_element_type=jnp.float32) + b
            if i < 3:
                h = jnp.maximum(h, 0.0).astype(jnp.bfloat16)
        return h

    assert out.shape == (BATCH, N_CLASSES)
    assert jnp.allclose(out, ref(x), atol=1e-2, rtol=1e-2)
    print("KERNEL_OK")
</pallas_src>

<mosaic_0001>
module attributes {stable_mosaic.version = 11 : i64} {
  func.func @mlp_kernel(%arg0: i32, %arg1: memref<16x3072xbf16, #tpu.memory_space<vmem>>, %arg2: memref<3072x64xbf16, #tpu.memory_space<vmem>>, %arg3: memref<1x64xf32, #tpu.memory_space<vmem>>, %arg4: memref<64x32xbf16, #tpu.memory_space<vmem>>, %arg5: memref<1x32xf32, #tpu.memory_space<vmem>>, %arg6: memref<32x16xbf16, #tpu.memory_space<vmem>>, %arg7: memref<1x16xf32, #tpu.memory_space<vmem>>, %arg8: memref<16x10xbf16, #tpu.memory_space<vmem>>, %arg9: memref<1x10xf32, #tpu.memory_space<vmem>>, %arg10: memref<16x10xf32, #tpu.memory_space<vmem>>) attributes {dimension_semantics = [#tpu.dimension_semantics<parallel>], iteration_bounds = array<i64: 1>, scalar_prefetch = 0 : i64, scratch_operands = 0 : i64, tpu.core_type = #tpu.core_type<tc>, window_params = [{transform_indices = @transform_0, window_bounds = array<i64: 16, 3072>}, {pipeline_mode = #tpu.pipeline_mode<synchronous>, transform_indices = @transform_1, window_bounds = array<i64: 3072, 64>}, {pipeline_mode = #tpu.pipeline_mode<synchronous>, transform_indices = @transform_2, window_bounds = array<i64: 1, 64>}, {pipeline_mode = #tpu.pipeline_mode<synchronous>, transform_indices = @transform_3, window_bounds = array<i64: 64, 32>}, {pipeline_mode = #tpu.pipeline_mode<synchronous>, transform_indices = @transform_4, window_bounds = array<i64: 1, 32>}, {pipeline_mode = #tpu.pipeline_mode<synchronous>, transform_indices = @transform_5, window_bounds = array<i64: 32, 16>}, {pipeline_mode = #tpu.pipeline_mode<synchronous>, transform_indices = @transform_6, window_bounds = array<i64: 1, 16>}, {pipeline_mode = #tpu.pipeline_mode<synchronous>, transform_indices = @transform_7, window_bounds = array<i64: 16, 10>}, {pipeline_mode = #tpu.pipeline_mode<synchronous>, transform_indices = @transform_8, window_bounds = array<i64: 1, 10>}, {transform_indices = @transform_9, window_bounds = array<i64: 16, 10>}]} {
    %c0 = arith.constant 0 : index
    %c0_0 = arith.constant 0 : index
    %0 = vector.load %arg1[%c0, %c0_0] : memref<16x3072xbf16, #tpu.memory_space<vmem>>, vector<16x3072xbf16>
    %c0_1 = arith.constant 0 : index
    %c0_2 = arith.constant 0 : index
    %1 = vector.load %arg2[%c0_1, %c0_2] : memref<3072x64xbf16, #tpu.memory_space<vmem>>, vector<3072x64xbf16>
    %cst = arith.constant dense<0.000000e+00> : vector<16x64xf32>
    %2 = tpu.matmul %0, %1, %cst {dimension_numbers = #tpu.dot_dimension_numbers<[1], [0], [0], [1], [0, 0, 1, 1], [], []>} : vector<16x3072xbf16>, vector<3072x64xbf16>, vector<16x64xf32> -> vector<16x64xf32>
    %c0_3 = arith.constant 0 : index
    %c0_4 = arith.constant 0 : index
    %3 = vector.load %arg3[%c0_3, %c0_4] : memref<1x64xf32, #tpu.memory_space<vmem>>, vector<1x64xf32>
    %4 = vector.broadcast %3 : vector<1x64xf32> to vector<16x64xf32>
    %5 = arith.addf %2, %4 : vector<16x64xf32>
    %cst_5 = arith.constant 0.000000e+00 : f32
    %6 = vector.broadcast %cst_5 : f32 to vector<16x64xf32>
    %7 = arith.maximumf %5, %6 : vector<16x64xf32>
    %8 = arith.truncf %7 : vector<16x64xf32> to vector<16x64xbf16>
    %c0_6 = arith.constant 0 : index
    %c0_7 = arith.constant 0 : index
    %9 = vector.load %arg4[%c0_6, %c0_7] : memref<64x32xbf16, #tpu.memory_space<vmem>>, vector<64x32xbf16>
    %cst_8 = arith.constant dense<0.000000e+00> : vector<16x32xf32>
    %10 = tpu.matmul %8, %9, %cst_8 {dimension_numbers = #tpu.dot_dimension_numbers<[1], [0], [0], [1], [0, 0, 1, 1], [], []>} : vector<16x64xbf16>, vector<64x32xbf16>, vector<16x32xf32> -> vector<16x32xf32>
    %c0_9 = arith.constant 0 : index
    %c0_10 = arith.constant 0 : index
    %11 = vector.load %arg5[%c0_9, %c0_10] : memref<1x32xf32, #tpu.memory_space<vmem>>, vector<1x32xf32>
    %12 = vector.broadcast %11 : vector<1x32xf32> to vector<16x32xf32>
    %13 = arith.addf %10, %12 : vector<16x32xf32>
    %cst_11 = arith.constant 0.000000e+00 : f32
    %14 = vector.broadcast %cst_11 : f32 to vector<16x32xf32>
    %15 = arith.maximumf %13, %14 : vector<16x32xf32>
    %16 = arith.truncf %15 : vector<16x32xf32> to vector<16x32xbf16>
    %c0_12 = arith.constant 0 : index
    %c0_13 = arith.constant 0 : index
    %17 = vector.load %arg6[%c0_12, %c0_13] : memref<32x16xbf16, #tpu.memory_space<vmem>>, vector<32x16xbf16>
    %cst_14 = arith.constant dense<0.000000e+00> : vector<16x16xf32>
    %18 = tpu.matmul %16, %17, %cst_14 {dimension_numbers = #tpu.dot_dimension_numbers<[1], [0], [0], [1], [0, 0, 1, 1], [], []>} : vector<16x32xbf16>, vector<32x16xbf16>, vector<16x16xf32> -> vector<16x16xf32>
    %c0_15 = arith.constant 0 : index
    %c0_16 = arith.constant 0 : index
    %19 = vector.load %arg7[%c0_15, %c0_16] : memref<1x16xf32, #tpu.memory_space<vmem>>, vector<1x16xf32>
    %20 = vector.broadcast %19 : vector<1x16xf32> to vector<16x16xf32>
    %21 = arith.addf %18, %20 : vector<16x16xf32>
    %cst_17 = arith.constant 0.000000e+00 : f32
    %22 = vector.broadcast %cst_17 : f32 to vector<16x16xf32>
    %23 = arith.maximumf %21, %22 : vector<16x16xf32>
    %24 = arith.truncf %23 : vector<16x16xf32> to vector<16x16xbf16>
    %c0_18 = arith.constant 0 : index
    %c0_19 = arith.constant 0 : index
    %25 = vector.load %arg8[%c0_18, %c0_19] : memref<16x10xbf16, #tpu.memory_space<vmem>>, vector<16x10xbf16>
    %cst_20 = arith.constant dense<0.000000e+00> : vector<16x10xf32>
    %26 = tpu.matmul %24, %25, %cst_20 {dimension_numbers = #tpu.dot_dimension_numbers<[1], [0], [0], [1], [0, 0, 1, 1], [], []>} : vector<16x16xbf16>, vector<16x10xbf16>, vector<16x10xf32> -> vector<16x10xf32>
    %c0_21 = arith.constant 0 : index
    %c0_22 = arith.constant 0 : index
    %27 = vector.load %arg9[%c0_21, %c0_22] : memref<1x10xf32, #tpu.memory_space<vmem>>, vector<1x10xf32>
    %28 = vector.broadcast %27 : vector<1x10xf32> to vector<16x10xf32>
    %29 = arith.addf %26, %28 : vector<16x10xf32>
    %c0_23 = arith.constant 0 : index
    %c0_24 = arith.constant 0 : index
    %30 = vector.load %arg10[%c0_23, %c0_24] : memref<16x10xf32, #tpu.memory_space<vmem>>, vector<16x10xf32>
    tpu.vector_store %arg10[%c0_23, %c0_24], %29 {strides = array<i32>} : memref<16x10xf32, #tpu.memory_space<vmem>>, vector<16x10xf32>,
    return
  }
  func.func @transform_0(%arg0: i32) -> (i32, i32) {
    %c0_i32 = arith.constant 0 : i32
    %c0_i32_0 = arith.constant 0 : i32
    return %arg0, %c0_i32 : i32, i32
  }
  func.func @transform_1(%arg0: i32) -> (i32, i32) {
    %c0_i32 = arith.constant 0 : i32
    %c0_i32_0 = arith.constant 0 : i32
    %c0_i32_1 = arith.constant 0 : i32
    return %c0_i32, %c0_i32_0 : i32, i32
  }
  func.func @transform_2(%arg0: i32) -> (i32, i32) {
    %c0_i32 = arith.constant 0 : i32
    %c0_i32_0 = arith.constant 0 : i32
    %c0_i32_1 = arith.constant 0 : i32
    return %c0_i32, %c0_i32_0 : i32, i32
  }
  func.func @transform_3(%arg0: i32) -> (i32, i32) {
    %c0_i32 = arith.constant 0 : i32
    %c0_i32_0 = arith.constant 0 : i32
    %c0_i32_1 = arith.constant 0 : i32
    return %c0_i32, %c0_i32_0 : i32, i32
  }
  func.func @transform_4(%arg0: i32) -> (i32, i32) {
    %c0_i32 = arith.constant 0 : i32
    %c0_i32_0 = arith.constant 0 : i32
    %c0_i32_1 = arith.constant 0 : i32
    return %c0_i32, %c0_i32_0 : i32, i32
  }
  func.func @transform_5(%arg0: i32) -> (i32, i32) {
    %c0_i32 = arith.constant 0 : i32
    %c0_i32_0 = arith.constant 0 : i32
    %c0_i32_1 = arith.constant 0 : i32
    return %c0_i32, %c0_i32_0 : i32, i32
  }
  func.func @transform_6(%arg0: i32) -> (i32, i32) {
    %c0_i32 = arith.constant 0 : i32
    %c0_i32_0 = arith.constant 0 : i32
    %c0_i32_1 = arith.constant 0 : i32
    return %c0_i32, %c0_i32_0 : i32, i32
  }
  func.func @transform_7(%arg0: i32) -> (i32, i32) {
    %c0_i32 = arith.constant 0 : i32
    %c0_i32_0 = arith.constant 0 : i32
    %c0_i32_1 = arith.constant 0 : i32
    return %c0_i32, %c0_i32_0 : i32, i32
  }
  func.func @transform_8(%arg0: i32) -> (i32, i32) {
    %c0_i32 = arith.constant 0 : i32
    %c0_i32_0 = arith.constant 0 : i32
    %c0_i32_1 = arith.constant 0 : i32
    return %c0_i32, %c0_i32_0 : i32, i32
  }
  func.func @transform_9(%arg0: i32) -> (i32, i32) {
    %c0_i32 = arith.constant 0 : i32
    %c0_i32_0 = arith.constant 0 : i32
    return %arg0, %c0_i32 : i32, i32
  }
}

</mosaic_0001>

<llo_original>
// kernel: tpu_custom_call.1
$region0: #{tpu_custom_call.1}
  #allocation0 [shape = 'u32[]', space=smem, size = 0x4, offset = 0x4, fixed_abs, tag = 'smem constant byte address 0x4 - core index']
  #allocation1 [shape = 'u32[144,128]{1,0:T(1,128)}', space=vmem, size = 0x12000, scoped, tag = 'internal scratch']
  %s0 = inlined_call_operand.vmem [shape: bf16[16,3072], index: 0, kind: input, shape index: {}]
  %s1 = inlined_call_operand.vmem [shape: bf16[3072,64], index: 1, kind: input, shape index: {}]
  %s2 = inlined_call_operand.vmem [shape: f32[1,64], index: 2, kind: input, shape index: {}]
  %s3 = inlined_call_operand.vmem [shape: bf16[64,32], index: 3, kind: input, shape index: {}]
  %s4 = inlined_call_operand.vmem [shape: f32[1,32], index: 4, kind: input, shape index: {}]
  %s5 = inlined_call_operand.vmem [shape: bf16[32,16], index: 5, kind: input, shape index: {}]
  %s6 = inlined_call_operand.vmem [shape: f32[1,16], index: 6, kind: input, shape index: {}]
  %s7 = inlined_call_operand.vmem [shape: bf16[16,10], index: 7, kind: input, shape index: {}]
  %s8 = inlined_call_operand.vmem [shape: f32[1,10], index: 8, kind: input, shape index: {}]
  %s9 = inlined_call_operand.hbm [shape: f32[16,10], index: 9, kind: output, shape index: {}]
  %s10 = sld [smem:[#allocation0]]
  $region46: #{tpu_custom_call.1} parent=0
    _
  %s12 = ssub.s32 1, %s10
  %s13 = scalar_select 0, %s12, %s10
  $region1: #{tpu_custom_call.1} parent=0
    #allocation2 [shape = 'u8[8192]{0}', space=vmem, size = 0x2000, scoped, tag = 'output window, operand 0, single buffered']
    #allocation3 [shape = 's32[1]{0}', space=sflag, size = 0x4, scoped, tag = 'scoped memory for tpu_custom_call.1']
    %14 = vsyncpa [#allocation3], 0
    // Predicated region
    $region2: #{tpu_custom_call.1} parent=1 // pred_check
      _
    $region3: #{tpu_custom_call.1} parent=1 // pred_check_branch
      %16 = sbr.rel (0) target = $region5
    $region4: #{tpu_custom_call.1} parent=1 // pred_region
      _
    $region5: #{tpu_custom_call.1} parent=1 // pred_fallthru
      _
    // Predicated region
    $region6: #{tpu_custom_call.1} parent=1 // pred_check
      _
    $region7: #{tpu_custom_call.1} parent=1 // pred_check_branch
      %18 = sbr.rel (0) target = $region9
    $region8: #{tpu_custom_call.1} parent=1 // pred_region
      _
    $region9: #{tpu_custom_call.1} parent=1 // pred_fallthru
      _
    // Predicated region
    $region10: #{tpu_custom_call.1} parent=1 // pred_check
      _
    $region11: #{tpu_custom_call.1} parent=1 // pred_check_branch
      %20 = sbr.rel (0) target = $region13
    $region12: #{tpu_custom_call.1} parent=1 // pred_region
      _
    $region13: #{tpu_custom_call.1} parent=1 // pred_fallthru
      _
    // Predicated region
    $region14: #{tpu_custom_call.1} parent=1 // pred_check
      _
    $region15: #{tpu_custom_call.1} parent=1 // pred_check_branch
      %22 = sbr.rel (0) target = $region17
    $region16: #{tpu_custom_call.1} parent=1 // pred_region
      _
    $region17: #{tpu_custom_call.1} parent=1 // pred_fallthru
      _
    // Predicated region
    $region18: #{tpu_custom_call.1} parent=1 // pred_check
      _
    $region19: #{tpu_custom_call.1} parent=1 // pred_check_branch
      %24 = sbr.rel (0) target = $region21
    $region20: #{tpu_custom_call.1} parent=1 // pred_region
      _
    $region21: #{tpu_custom_call.1} parent=1 // pred_fallthru
      _
    // Predicated region
    $region22: #{tpu_custom_call.1} parent=1 // pred_check
      _
    $region23: #{tpu_custom_call.1} parent=1 // pred_check_branch
      %26 = sbr.rel (0) target = $region25
    $region24: #{tpu_custom_call.1} parent=1 // pred_region
      _
    $region25: #{tpu_custom_call.1} parent=1 // pred_fallthru
      _
    // Predicated region
    $region26: #{tpu_custom_call.1} parent=1 // pred_check
      _
    $region27: #{tpu_custom_call.1} parent=1 // pred_check_branch
      %28 = sbr.rel (0) target = $region29
    $region28: #{tpu_custom_call.1} parent=1 // pred_region
      _
    $region29: #{tpu_custom_call.1} parent=1 // pred_fallthru
      _
    // Predicated region
    $region30: #{tpu_custom_call.1} parent=1 // pred_check
      _
    $region31: #{tpu_custom_call.1} parent=1 // pred_check_branch
      %30 = sbr.rel (0) target = $region33
    $region32: #{tpu_custom_call.1} parent=1 // pred_region
      _
    $region33: #{tpu_custom_call.1} parent=1 // pred_fallthru
      _
    // Predicated region
    $region34: #{tpu_custom_call.1} parent=1 // pred_check
      _
    $region35: #{tpu_custom_call.1} parent=1 // pred_check_branch
      %32 = sbr.rel (0) target = $region37
    $region36: #{tpu_custom_call.1} parent=1 // pred_region
      _
    $region37: #{tpu_custom_call.1} parent=1 // pred_fallthru
      _
    %v34 = vld [vmem:[%s0] sm:$0xff]
    %v35 = vld [vmem:[%s0 + $0x8] sm:$0xff]
    %v36 = vld [vmem:[%s0 + $0x10] sm:$0xff]
    %v37 = vld [vmem:[%s0 + $0x18] sm:$0xff]
    %v38 = vld [vmem:[%s0 + $0x20] sm:$0xff]
    %v39 = vld [vmem:[%s0 + $0x28] sm:$0xff]
    %v40 = vld [vmem:[%s0 + $0x30] sm:$0xff]
    %v41 = vld [vmem:[%s0 + $0x38] sm:$0xff]
    %v42 = vld [vmem:[%s0 + $0x40] sm:$0xff]
    %v43 = vld [vmem:[%s0 + $0x48] sm:$0xff]
    %v44 = vld [vmem:[%s0 + $0x50] sm:$0xff]
    %v45 = vld [vmem:[%s0 + $0x58] sm:$0xff]
    %v46 = vld [vmem:[%s0 + $0x60] sm:$0xff]
    %v47 = vld [vmem:[%s0 + $0x68] sm:$0xff]
    %v48 = vld [vmem:[%s0 + $0x70] sm:$0xff]
    %v49 = vld [vmem:[%s0 + $0x78] sm:$0xff]
    %v50 = vld [vmem:[%s0 + $0x80] sm:$0xff]
    %v51 = vld [vmem:[%s0 + $0x88] sm:$0xff]
    %v52 = vld [vmem:[%s0 + $0x90] sm:$0xff]
    %v53 = vld [vmem:[%s0 + $0x98] sm:$0xff]
    %v54 = vld [vmem:[%s0 + $0xa0] sm:$0xff]
    %v55 = vld [vmem:[%s0 + $0xa8] sm:$0xff]
    %v56 = vld [vmem:[%s0 + $0xb0] sm:$0xff]
    %v57 = vld [vmem:[%s0 + $0xb8] sm:$0xff]
    %v58 = vld [vmem:[%s1] sm:$0xf]
    %v59 = vld [vmem:[%s1 + $0x4] sm:$0xf]
    %v60 = vld [vmem:[%s1 + $0x8] sm:$0xf]
    %v61 = vld [vmem:[%s1 + $0xc] sm:$0xf]
    %v62 = vld [vmem:[%s1 + $0x10] sm:$0xf]
    %v63 = vld [vmem:[%s1 + $0x14] sm:$0xf]
    %v64 = vld [vmem:[%s1 + $0x18] sm:$0xf]
    %v65 = vld [vmem:[%s1 + $0x1c] sm:$0xf]
    %v66 = vld [vmem:[%s1 + $0x20] sm:$0xf]
    %v67 = vld [vmem:[%s1 + $0x24] sm:$0xf]
    %v68 = vld [vmem:[%s1 + $0x28] sm:$0xf]
    %v69 = vld [vmem:[%s1 + $0x2c] sm:$0xf]
    %v70 = vld [vmem:[%s1 + $0x30] sm:$0xf]
    %v71 = vld [vmem:[%s1 + $0x34] sm:$0xf]
    %v72 = vld [vmem:[%s1 + $0x38] sm:$0xf]
    %v73 = vld [vmem:[%s1 + $0x3c] sm:$0xf]
    %v74 = vld [vmem:[%s1 + $0x40] sm:$0xf]
    %v75 = vld [vmem:[%s1 + $0x44] sm:$0xf]
    %v76 = vld [vmem:[%s1 + $0x48] sm:$0xf]
    %v77 = vld [vmem:[%s1 + $0x4c] sm:$0xf]
    %v78 = vld [vmem:[%s1 + $0x50] sm:$0xf]
    %v79 = vld [vmem:[%s1 + $0x54] sm:$0xf]
    %v80 = vld [vmem:[%s1 + $0x58] sm:$0xf]
    %v81 = vld [vmem:[%s1 + $0x5c] sm:$0xf]
    %v82 = vld [vmem:[%s1 + $0x60] sm:$0xf]
    %v83 = vld [vmem:[%s1 + $0x64] sm:$0xf]
    %v84 = vld [vmem:[%s1 + $0x68] sm:$0xf]
    %v85 = vld [vmem:[%s1 + $0x6c] sm:$0xf]
    %v86 = vld [vmem:[%s1 + $0x70] sm:$0xf]
    %v87 = vld [vmem:[%s1 + $0x74] sm:$0xf]
    %v88 = vld [vmem:[%s1 + $0x78] sm:$0xf]
    %v89 = vld [vmem:[%s1 + $0x7c] sm:$0xf]
    %v90 = vld [vmem:[%s1 + $0x80] sm:$0xf]
    %v91 = vld [vmem:[%s1 + $0x84] sm:$0xf]
    %v92 = vld [vmem:[%s1 + $0x88] sm:$0xf]
    %v93 = vld [vmem:[%s1 + $0x8c] sm:$0xf]
    %v94 = vld [vmem:[%s1 + $0x90] sm:$0xf]
    %v95 = vld [vmem:[%s1 + $0x94] sm:$0xf]
    %v96 = vld [vmem:[%s1 + $0x98] sm:$0xf]
    %v97 = vld [vmem:[%s1 + $0x9c] sm:$0xf]
    %v98 = vld [vmem:[%s1 + $0xa0] sm:$0xf]
    %v99 = vld [vmem:[%s1 + $0xa4] sm:$0xf]
    %v100 = vld [vmem:[%s1 + $0xa8] sm:$0xf]
    %v101 = vld [vmem:[%s1 + $0xac] sm:$0xf]
    %v102 = vld [vmem:[%s1 + $0xb0] sm:$0xf]
    %v103 = vld [vmem:[%s1 + $0xb4] sm:$0xf]
    %v104 = vld [vmem:[%s1 + $0xb8] sm:$0xf]
    %v105 = vld [vmem:[%s1 + $0xbc] sm:$0xf]
    %v106 = vld [vmem:[%s1 + $0xc0] sm:$0xf]
    %v107 = vld [vmem:[%s1 + $0xc4] sm:$0xf]
    %v108 = vld [vmem:[%s1 + $0xc8] sm:$0xf]
    %v109 = vld [vmem:[%s1 + $0xcc] sm:$0xf]
    %v110 = vld [vmem:[%s1 + $0xd0] sm:$0xf]
    %v111 = vld [vmem:[%s1 + $0xd4] sm:$0xf]
    %v112 = vld [vmem:[%s1 + $0xd8] sm:$0xf]
    %v113 = vld [vmem:[%s1 + $0xdc] sm:$0xf]
    %v114 = vld [vmem:[%s1 + $0xe0] sm:$0xf]
    %v115 = vld [vmem:[%s1 + $0xe4] sm:$0xf]
    %v116 = vld [vmem:[%s1 + $0xe8] sm:$0xf]
    %v117 = vld [vmem:[%s1 + $0xec] sm:$0xf]
    %v118 = vld [vmem:[%s1 + $0xf0] sm:$0xf]
    %v119 = vld [vmem:[%s1 + $0xf4] sm:$0xf]
    %v120 = vld [vmem:[%s1 + $0xf8] sm:$0xf]
    %v121 = vld [vmem:[%s1 + $0xfc] sm:$0xf]
    %v122 = vld [vmem:[%s1 + $0x100] sm:$0xf]
    %v123 = vld [vmem:[%s1 + $0x104] sm:$0xf]
    %v124 = vld [vmem:[%s1 + $0x108] sm:$0xf]
    %v125 = vld [vmem:[%s1 + $0x10c] sm:$0xf]
    %v126 = vld [vmem:[%s1 + $0x110] sm:$0xf]
    %v127 = vld [vmem:[%s1 + $0x114] sm:$0xf]
    %v128 = vld [vmem:[%s1 + $0x118] sm:$0xf]
    %v129 = vld [vmem:[%s1 + $0x11c] sm:$0xf]
    %v130 = vld [vmem:[%s1 + $0x120] sm:$0xf]
    %v131 = vld [vmem:[%s1 + $0x124] sm:$0xf]
    %v132 = vld [vmem:[%s1 + $0x128] sm:$0xf]
    %v133 = vld [vmem:[%s1 + $0x12c] sm:$0xf]
    %v134 = vld [vmem:[%s1 + $0x130] sm:$0xf]
    %v135 = vld [vmem:[%s1 + $0x134] sm:$0xf]
    %v136 = vld [vmem:[%s1 + $0x138] sm:$0xf]
    %v137 = vld [vmem:[%s1 + $0x13c] sm:$0xf]
    %v138 = vld [vmem:[%s1 + $0x140] sm:$0xf]
    %v139 = vld [vmem:[%s1 + $0x144] sm:$0xf]
    %v140 = vld [vmem:[%s1 + $0x148] sm:$0xf]
    %v141 = vld [vmem:[%s1 + $0x14c] sm:$0xf]
    %v142 = vld [vmem:[%s1 + $0x150] sm:$0xf]
    %v143 = vld [vmem:[%s1 + $0x154] sm:$0xf]
    %v144 = vld [vmem:[%s1 + $0x158] sm:$0xf]
    %v145 = vld [vmem:[%s1 + $0x15c] sm:$0xf]
    %v146 = vld [vmem:[%s1 + $0x160] sm:$0xf]
    %v147 = vld [vmem:[%s1 + $0x164] sm:$0xf]
    %v148 = vld [vmem:[%s1 + $0x168] sm:$0xf]
    %v149 = vld [vmem:[%s1 + $0x16c] sm:$0xf]
    %v150 = vld [vmem:[%s1 + $0x170] sm:$0xf]
    %v151 = vld [vmem:[%s1 + $0x174] sm:$0xf]
    %v152 = vld [vmem:[%s1 + $0x178] sm:$0xf]
    %v153 = vld [vmem:[%s1 + $0x17c] sm:$0xf]
    %v154 = vld [vmem:[%s1 + $0x180] sm:$0xf]
    %v155 = vld [vmem:[%s1 + $0x184] sm:$0xf]
    %v156 = vld [vmem:[%s1 + $0x188] sm:$0xf]
    %v157 = vld [vmem:[%s1 + $0x18c] sm:$0xf]
    %v158 = vld [vmem:[%s1 + $0x190] sm:$0xf]
    %v159 = vld [vmem:[%s1 + $0x194] sm:$0xf]
    %v160 = vld [vmem:[%s1 + $0x198] sm:$0xf]
    %v161 = vld [vmem:[%s1 + $0x19c] sm:$0xf]
    %v162 = vld [vmem:[%s1 + $0x1a0] sm:$0xf]
    %v163 = vld [vmem:[%s1 + $0x1a4] sm:$0xf]
    %v164 = vld [vmem:[%s1 + $0x1a8] sm:$0xf]
    %v165 = vld [vmem:[%s1 + $0x1ac] sm:$0xf]
    %v166 = vld [vmem:[%s1 + $0x1b0] sm:$0xf]
    %v167 = vld [vmem:[%s1 + $0x1b4] sm:$0xf]
    %v168 = vld [vmem:[%s1 + $0x1b8] sm:$0xf]
    %v169 = vld [vmem:[%s1 + $0x1bc] sm:$0xf]
    %v170 = vld [vmem:[%s1 + $0x1c0] sm:$0xf]
    %v171 = vld [vmem:[%s1 + $0x1c4] sm:$0xf]
    %v172 = vld [vmem:[%s1 + $0x1c8] sm:$0xf]
    %v173 = vld [vmem:[%s1 + $0x1cc] sm:$0xf]
    %v174 = vld [vmem:[%s1 + $0x1d0] sm:$0xf]
    %v175 = vld [vmem:[%s1 + $0x1d4] sm:$0xf]
    %v176 = vld [vmem:[%s1 + $0x1d8] sm:$0xf]
    %v177 = vld [vmem:[%s1 + $0x1dc] sm:$0xf]
    %v178 = vld [vmem:[%s1 + $0x1e0] sm:$0xf]
    %v179 = vld [vmem:[%s1 + $0x1e4] sm:$0xf]
    %v180 = vld [vmem:[%s1 + $0x1e8] sm:$0xf]
    %v181 = vld [vmem:[%s1 + $0x1ec] sm:$0xf]
    %v182 = vld [vmem:[%s1 + $0x1f0] sm:$0xf]
    %v183 = vld [vmem:[%s1 + $0x1f4] sm:$0xf]
    %v184 = vld [vmem:[%s1 + $0x1f8] sm:$0xf]
    %v185 = vld [vmem:[%s1 + $0x1fc] sm:$0xf]
    %v186 = vld [vmem:[%s1 + $0x200] sm:$0xf]
    %v187 = vld [vmem:[%s1 + $0x204] sm:$0xf]
    %v188 = vld [vmem:[%s1 + $0x208] sm:$0xf]
    %v189 = vld [vmem:[%s1 + $0x20c] sm:$0xf]
    %v190 = vld [vmem:[%s1 + $0x210] sm:$0xf]
    %v191 = vld [vmem:[%s1 + $0x214] sm:$0xf]
    %v192 = vld [vmem:[%s1 + $0x218] sm:$0xf]
    %v193 = vld [vmem:[%s1 + $0x21c] sm:$0xf]
    %v194 = vld [vmem:[%s1 + $0x220] sm:$0xf]
    %v195 = vld [vmem:[%s1 + $0x224] sm:$0xf]
    %v196 = vld [vmem:[%s1 + $0x228] sm:$0xf]
    %v197 = vld [vmem:[%s1 + $0x22c] sm:$0xf]
    %v198 = vld [vmem:[%s1 + $0x230] sm:$0xf]
    %v199 = vld [vmem:[%s1 + $0x234] sm:$0xf]
    %v200 = vld [vmem:[%s1 + $0x238] sm:$0xf]
    %v201 = vld [vmem:[%s1 + $0x23c] sm:$0xf]
    %v202 = vld [vmem:[%s1 + $0x240] sm:$0xf]
    %v203 = vld [vmem:[%s1 + $0x244] sm:$0xf]
    %v204 = vld [vmem:[%s1 + $0x248] sm:$0xf]
    %v205 = vld [vmem:[%s1 + $0x24c] sm:$0xf]
    %v206 = vld [vmem:[%s1 + $0x250] sm:$0xf]
    %v207 = vld [vmem:[%s1 + $0x254] sm:$0xf]
    %v208 = vld [vmem:[%s1 + $0x258] sm:$0xf]
    %v209 = vld [vmem:[%s1 + $0x25c] sm:$0xf]
    %v210 = vld [vmem:[%s1 + $0x260] sm:$0xf]
    %v211 = vld [vmem:[%s1 + $0x264] sm:$0xf]
    %v212 = vld [vmem:[%s1 + $0x268] sm:$0xf]
    %v213 = vld [vmem:[%s1 + $0x26c] sm:$0xf]
    %v214 = vld [vmem:[%s1 + $0x270] sm:$0xf]
    %v215 = vld [vmem:[%s1 + $0x274] sm:$0xf]
    %v216 = vld [vmem:[%s1 + $0x278] sm:$0xf]
    %v217 = vld [vmem:[%s1 + $0x27c] sm:$0xf]
    %v218 = vld [vmem:[%s1 + $0x280] sm:$0xf]
    %v219 = vld [vmem:[%s1 + $0x284] sm:$0xf]
    %v220 = vld [vmem:[%s1 + $0x288] sm:$0xf]
    %v221 = vld [vmem:[%s1 + $0x28c] sm:$0xf]
    %v222 = vld [vmem:[%s1 + $0x290] sm:$0xf]
    %v223 = vld [vmem:[%s1 + $0x294] sm:$0xf]
    %v224 = vld [vmem:[%s1 + $0x298] sm:$0xf]
    %v225 = vld [vmem:[%s1 + $0x29c] sm:$0xf]
    %v226 = vld [vmem:[%s1 + $0x2a0] sm:$0xf]
    %v227 = vld [vmem:[%s1 + $0x2a4] sm:$0xf]
    %v228 = vld [vmem:[%s1 + $0x2a8] sm:$0xf]
    %v229 = vld [vmem:[%s1 + $0x2ac] sm:$0xf]
    %v230 = vld [vmem:[%s1 + $0x2b0] sm:$0xf]
    %v231 = vld [vmem:[%s1 + $0x2b4] sm:$0xf]
    %v232 = vld [vmem:[%s1 + $0x2b8] sm:$0xf]
    %v233 = vld [vmem:[%s1 + $0x2bc] sm:$0xf]
    %v234 = vld [vmem:[%s1 + $0x2c0] sm:$0xf]
    %v235 = vld [vmem:[%s1 + $0x2c4] sm:$0xf]
    %v236 = vld [vmem:[%s1 + $0x2c8] sm:$0xf]
    %v237 = vld [vmem:[%s1 + $0x2cc] sm:$0xf]
    %v238 = vld [vmem:[%s1 + $0x2d0] sm:$0xf]
    %v239 = vld [vmem:[%s1 + $0x2d4] sm:$0xf]
    %v240 = vld [vmem:[%s1 + $0x2d8] sm:$0xf]
    %v241 = vld [vmem:[%s1 + $0x2dc] sm:$0xf]
    %v242 = vld [vmem:[%s1 + $0x2e0] sm:$0xf]
    %v243 = vld [vmem:[%s1 + $0x2e4] sm:$0xf]
    %v244 = vld [vmem:[%s1 + $0x2e8] sm:$0xf]
    %v245 = vld [vmem:[%s1 + $0x2ec] sm:$0xf]
    %v246 = vld [vmem:[%s1 + $0x2f0] sm:$0xf]
    %v247 = vld [vmem:[%s1 + $0x2f4] sm:$0xf]
    %v248 = vld [vmem:[%s1 + $0x2f8] sm:$0xf]
    %v249 = vld [vmem:[%s1 + $0x2fc] sm:$0xf]
    %v250 = vld [vmem:[%s1 + $0x300] sm:$0xf]
    %v251 = vld [vmem:[%s1 + $0x304] sm:$0xf]
    %v252 = vld [vmem:[%s1 + $0x308] sm:$0xf]
    %v253 = vld [vmem:[%s1 + $0x30c] sm:$0xf]
    %v254 = vld [vmem:[%s1 + $0x310] sm:$0xf]
    %v255 = vld [vmem:[%s1 + $0x314] sm:$0xf]
    %v256 = vld [vmem:[%s1 + $0x318] sm:$0xf]
    %v257 = vld [vmem:[%s1 + $0x31c] sm:$0xf]
    %v258 = vld [vmem:[%s1 + $0x320] sm:$0xf]
    %v259 = vld [vmem:[%s1 + $0x324] sm:$0xf]
    %v260 = vld [vmem:[%s1 + $0x328] sm:$0xf]
    %v261 = vld [vmem:[%s1 + $0x32c] sm:$0xf]
    %v262 = vld [vmem:[%s1 + $0x330] sm:$0xf]
    %v263 = vld [vmem:[%s1 + $0x334] sm:$0xf]
    %v264 = vld [vmem:[%s1 + $0x338] sm:$0xf]
    %v265 = vld [vmem:[%s1 + $0x33c] sm:$0xf]
    %v266 = vld [vmem:[%s1 + $0x340] sm:$0xf]
    %v267 = vld [vmem:[%s1 + $0x344] sm:$0xf]
    %v268 = vld [vmem:[%s1 + $0x348] sm:$0xf]
    %v269 = vld [vmem:[%s1 + $0x34c] sm:$0xf]
    %v270 = vld [vmem:[%s1 + $0x350] sm:$0xf]
    %v271 = vld [vmem:[%s1 + $0x354] sm:$0xf]
    %v272 = vld [vmem:[%s1 + $0x358] sm:$0xf]
    %v273 = vld [vmem:[%s1 + $0x35c] sm:$0xf]
    %v274 = vld [vmem:[%s1 + $0x360] sm:$0xf]
    %v275 = vld [vmem:[%s1 + $0x364] sm:$0xf]
    %v276 = vld [vmem:[%s1 + $0x368] sm:$0xf]
    %v277 = vld [vmem:[%s1 + $0x36c] sm:$0xf]
    %v278 = vld [vmem:[%s1 + $0x370] sm:$0xf]
    %v279 = vld [vmem:[%s1 + $0x374] sm:$0xf]
    %v280 = vld [vmem:[%s1 + $0x378] sm:$0xf]
    %v281 = vld [vmem:[%s1 + $0x37c] sm:$0xf]
    %v282 = vld [vmem:[%s1 + $0x380] sm:$0xf]
    %v283 = vld [vmem:[%s1 + $0x384] sm:$0xf]
    %v284 = vld [vmem:[%s1 + $0x388] sm:$0xf]
    %v285 = vld [vmem:[%s1 + $0x38c] sm:$0xf]
    %v286 = vld [vmem:[%s1 + $0x390] sm:$0xf]
    %v287 = vld [vmem:[%s1 + $0x394] sm:$0xf]
    %v288 = vld [vmem:[%s1 + $0x398] sm:$0xf]
    %v289 = vld [vmem:[%s1 + $0x39c] sm:$0xf]
    %v290 = vld [vmem:[%s1 + $0x3a0] sm:$0xf]
    %v291 = vld [vmem:[%s1 + $0x3a4] sm:$0xf]
    %v292 = vld [vmem:[%s1 + $0x3a8] sm:$0xf]
    %v293 = vld [vmem:[%s1 + $0x3ac] sm:$0xf]
    %v294 = vld [vmem:[%s1 + $0x3b0] sm:$0xf]
    %v295 = vld [vmem:[%s1 + $0x3b4] sm:$0xf]
    %v296 = vld [vmem:[%s1 + $0x3b8] sm:$0xf]
    %v297 = vld [vmem:[%s1 + $0x3bc] sm:$0xf]
    %v298 = vld [vmem:[%s1 + $0x3c0] sm:$0xf]
    %v299 = vld [vmem:[%s1 + $0x3c4] sm:$0xf]
    %v300 = vld [vmem:[%s1 + $0x3c8] sm:$0xf]
    %v301 = vld [vmem:[%s1 + $0x3cc] sm:$0xf]
    %v302 = vld [vmem:[%s1 + $0x3d0] sm:$0xf]
    %v303 = vld [vmem:[%s1 + $0x3d4] sm:$0xf]
    %v304 = vld [vmem:[%s1 + $0x3d8] sm:$0xf]
    %v305 = vld [vmem:[%s1 + $0x3dc] sm:$0xf]
    %v306 = vld [vmem:[%s1 + $0x3e0] sm:$0xf]
    %v307 = vld [vmem:[%s1 + $0x3e4] sm:$0xf]
    %v308 = vld [vmem:[%s1 + $0x3e8] sm:$0xf]
    %v309 = vld [vmem:[%s1 + $0x3ec] sm:$0xf]
    %v310 = vld [vmem:[%s1 + $0x3f0] sm:$0xf]
    %v311 = vld [vmem:[%s1 + $0x3f4] sm:$0xf]
    %v312 = vld [vmem:[%s1 + $0x3f8] sm:$0xf]
    %v313 = vld [vmem:[%s1 + $0x3fc] sm:$0xf]
    %v314 = vld [vmem:[%s1 + $0x400] sm:$0xf]
    %v315 = vld [vmem:[%s1 + $0x404] sm:$0xf]
    %v316 = vld [vmem:[%s1 + $0x408] sm:$0xf]
    %v317 = vld [vmem:[%s1 + $0x40c] sm:$0xf]
    %v318 = vld [vmem:[%s1 + $0x410] sm:$0xf]
    %v319 = vld [vmem:[%s1 + $0x414] sm:$0xf]
    %v320 = vld [vmem:[%s1 + $0x418] sm:$0xf]
    %v321 = vld [vmem:[%s1 + $0x41c] sm:$0xf]
    %v322 = vld [vmem:[%s1 + $0x420] sm:$0xf]
    %v323 = vld [vmem:[%s1 + $0x424] sm:$0xf]
    %v324 = vld [vmem:[%s1 + $0x428] sm:$0xf]
    %v325 = vld [vmem:[%s1 + $0x42c] sm:$0xf]
    %v326 = vld [vmem:[%s1 + $0x430] sm:$0xf]
    %v327 = vld [vmem:[%s1 + $0x434] sm:$0xf]
    %v328 = vld [vmem:[%s1 + $0x438] sm:$0xf]
    %v329 = vld [vmem:[%s1 + $0x43c] sm:$0xf]
    %v330 = vld [vmem:[%s1 + $0x440] sm:$0xf]
    %v331 = vld [vmem:[%s1 + $0x444] sm:$0xf]
    %v332 = vld [vmem:[%s1 + $0x448] sm:$0xf]
    %v333 = vld [vmem:[%s1 + $0x44c] sm:$0xf]
    %v334 = vld [vmem:[%s1 + $0x450] sm:$0xf]
    %v335 = vld [vmem:[%s1 + $0x454] sm:$0xf]
    %v336 = vld [vmem:[%s1 + $0x458] sm:$0xf]
    %v337 = vld [vmem:[%s1 + $0x45c] sm:$0xf]
    %v338 = vld [vmem:[%s1 + $0x460] sm:$0xf]
    %v339 = vld [vmem:[%s1 + $0x464] sm:$0xf]
    %v340 = vld [vmem:[%s1 + $0x468] sm:$0xf]
    %v341 = vld [vmem:[%s1 + $0x46c] sm:$0xf]
    %v342 = vld [vmem:[%s1 + $0x470] sm:$0xf]
    %v343 = vld [vmem:[%s1 + $0x474] sm:$0xf]
    %v344 = vld [vmem:[%s1 + $0x478] sm:$0xf]
    %v345 = vld [vmem:[%s1 + $0x47c] sm:$0xf]
    %v346 = vld [vmem:[%s1 + $0x480] sm:$0xf]
    %v347 = vld [vmem:[%s1 + $0x484] sm:$0xf]
    %v348 = vld [vmem:[%s1 + $0x488] sm:$0xf]
    %v349 = vld [vmem:[%s1 + $0x48c] sm:$0xf]
    %v350 = vld [vmem:[%s1 + $0x490] sm:$0xf]
    %v351 = vld [vmem:[%s1 + $0x494] sm:$0xf]
    %v352 = vld [vmem:[%s1 + $0x498] sm:$0xf]
    %v353 = vld [vmem:[%s1 + $0x49c] sm:$0xf]
    %v354 = vld [vmem:[%s1 + $0x4a0] sm:$0xf]
    %v355 = vld [vmem:[%s1 + $0x4a4] sm:$0xf]
    %v356 = vld [vmem:[%s1 + $0x4a8] sm:$0xf]
    %v357 = vld [vmem:[%s1 + $0x4ac] sm:$0xf]
    %v358 = vld [vmem:[%s1 + $0x4b0] sm:$0xf]
    %v359 = vld [vmem:[%s1 + $0x4b4] sm:$0xf]
    %v360 = vld [vmem:[%s1 + $0x4b8] sm:$0xf]
    %v361 = vld [vmem:[%s1 + $0x4bc] sm:$0xf]
    %v362 = vld [vmem:[%s1 + $0x4c0] sm:$0xf]
    %v363 = vld [vmem:[%s1 + $0x4c4] sm:$0xf]
    %v364 = vld [vmem:[%s1 + $0x4c8] sm:$0xf]
    %v365 = vld [vmem:[%s1 + $0x4cc] sm:$0xf]
    %v366 = vld [vmem:[%s1 + $0x4d0] sm:$0xf]
    %v367 = vld [vmem:[%s1 + $0x4d4] sm:$0xf]
    %v368 = vld [vmem:[%s1 + $0x4d8] sm:$0xf]
    %v369 = vld [vmem:[%s1 + $0x4dc] sm:$0xf]
    %v370 = vld [vmem:[%s1 + $0x4e0] sm:$0xf]
    %v371 = vld [vmem:[%s1 + $0x4e4] sm:$0xf]
    %v372 = vld [vmem:[%s1 + $0x4e8] sm:$0xf]
    %v373 = vld [vmem:[%s1 + $0x4ec] sm:$0xf]
    %v374 = vld [vmem:[%s1 + $0x4f0] sm:$0xf]
    %v375 = vld [vmem:[%s1 + $0x4f4] sm:$0xf]
    %v376 = vld [vmem:[%s1 + $0x4f8] sm:$0xf]
    %v377 = vld [vmem:[%s1 + $0x4fc] sm:$0xf]
    %v378 = vld [vmem:[%s1 + $0x500] sm:$0xf]
    %v379 = vld [vmem:[%s1 + $0x504] sm:$0xf]
    %v380 = vld [vmem:[%s1 + $0x508] sm:$0xf]
    %v381 = vld [vmem:[%s1 + $0x50c] sm:$0xf]
    %v382 = vld [vmem:[%s1 + $0x510] sm:$0xf]
    %v383 = vld [vmem:[%s1 + $0x514] sm:$0xf]
    %v384 = vld [vmem:[%s1 + $0x518] sm:$0xf]
    %v385 = vld [vmem:[%s1 + $0x51c] sm:$0xf]
    %v386 = vld [vmem:[%s1 + $0x520] sm:$0xf]
    %v387 = vld [vmem:[%s1 + $0x524] sm:$0xf]
    %v388 = vld [vmem:[%s1 + $0x528] sm:$0xf]
    %v389 = vld [vmem:[%s1 + $0x52c] sm:$0xf]
    %v390 = vld [vmem:[%s1 + $0x530] sm:$0xf]
    %v391 = vld [vmem:[%s1 + $0x534] sm:$0xf]
    %v392 = vld [vmem:[%s1 + $0x538] sm:$0xf]
    %v393 = vld [vmem:[%s1 + $0x53c] sm:$0xf]
    %v394 = vld [vmem:[%s1 + $0x540] sm:$0xf]
    %v395 = vld [vmem:[%s1 + $0x544] sm:$0xf]
    %v396 = vld [vmem:[%s1 + $0x548] sm:$0xf]
    %v397 = vld [vmem:[%s1 + $0x54c] sm:$0xf]
    %v398 = vld [vmem:[%s1 + $0x550] sm:$0xf]
    %v399 = vld [vmem:[%s1 + $0x554] sm:$0xf]
    %v400 = vld [vmem:[%s1 + $0x558] sm:$0xf]
    %v401 = vld [vmem:[%s1 + $0x55c] sm:$0xf]
    %v402 = vld [vmem:[%s1 + $0x560] sm:$0xf]
    %v403 = vld [vmem:[%s1 + $0x564] sm:$0xf]
    %v404 = vld [vmem:[%s1 + $0x568] sm:$0xf]
    %v405 = vld [vmem:[%s1 + $0x56c] sm:$0xf]
    %v406 = vld [vmem:[%s1 + $0x570] sm:$0xf]
    %v407 = vld [vmem:[%s1 + $0x574] sm:$0xf]
    %v408 = vld [vmem:[%s1 + $0x578] sm:$0xf]
    %v409 = vld [vmem:[%s1 + $0x57c] sm:$0xf]
    %v410 = vld [vmem:[%s1 + $0x580] sm:$0xf]
    %v411 = vld [vmem:[%s1 + $0x584] sm:$0xf]
    %v412 = vld [vmem:[%s1 + $0x588] sm:$0xf]
    %v413 = vld [vmem:[%s1 + $0x58c] sm:$0xf]
    %v414 = vld [vmem:[%s1 + $0x590] sm:$0xf]
    %v415 = vld [vmem:[%s1 + $0x594] sm:$0xf]
    %v416 = vld [vmem:[%s1 + $0x598] sm:$0xf]
    %v417 = vld [vmem:[%s1 + $0x59c] sm:$0xf]
    %v418 = vld [vmem:[%s1 + $0x5a0] sm:$0xf]
    %v419 = vld [vmem:[%s1 + $0x5a4] sm:$0xf]
    %v420 = vld [vmem:[%s1 + $0x5a8] sm:$0xf]
    %v421 = vld [vmem:[%s1 + $0x5ac] sm:$0xf]
    %v422 = vld [vmem:[%s1 + $0x5b0] sm:$0xf]
    %v423 = vld [vmem:[%s1 + $0x5b4] sm:$0xf]
    %v424 = vld [vmem:[%s1 + $0x5b8] sm:$0xf]
    %v425 = vld [vmem:[%s1 + $0x5bc] sm:$0xf]
    %v426 = vld [vmem:[%s1 + $0x5c0] sm:$0xf]
    %v427 = vld [vmem:[%s1 + $0x5c4] sm:$0xf]
    %v428 = vld [vmem:[%s1 + $0x5c8] sm:$0xf]
    %v429 = vld [vmem:[%s1 + $0x5cc] sm:$0xf]
    %v430 = vld [vmem:[%s1 + $0x5d0] sm:$0xf]
    %v431 = vld [vmem:[%s1 + $0x5d4] sm:$0xf]
    %v432 = vld [vmem:[%s1 + $0x5d8] sm:$0xf]
    %v433 = vld [vmem:[%s1 + $0x5dc] sm:$0xf]
    %v434 = vld [vmem:[%s1 + $0x5e0] sm:$0xf]
    %v435 = vld [vmem:[%s1 + $0x5e4] sm:$0xf]
    %v436 = vld [vmem:[%s1 + $0x5e8] sm:$0xf]
    %v437 = vld [vmem:[%s1 + $0x5ec] sm:$0xf]
    %v438 = vld [vmem:[%s1 + $0x5f0] sm:$0xf]
    %v439 = vld [vmem:[%s1 + $0x5f4] sm:$0xf]
    %v440 = vld [vmem:[%s1 + $0x5f8] sm:$0xf]
    %v441 = vld [vmem:[%s1 + $0x5fc] sm:$0xf]
    %v442 = vld [vmem:[%s2] sm:$0x1]
    %v444 = vlaneseq
    %v445 = vshrl.u32 %v444, 7
    %v446 = vsub.s32 0, %v445
    %v447 = vrot.slane %v442, %v446
    %v473 = vunpack.c.l.b16 %v34
    %v474 = vunpack.c.h.b16 %v34
    %v475 = vunpack.c.l.b16 %v35
    %v476 = vunpack.c.h.b16 %v35
    %v477 = vunpack.c.l.b16 %v36
    %v478 = vunpack.c.h.b16 %v36
    %v479 = vunpack.c.l.b16 %v37
    %v480 = vunpack.c.h.b16 %v37
    %v481 = vunpack.c.l.b16 %v38
    %v482 = vunpack.c.h.b16 %v38
    %v483 = vunpack.c.l.b16 %v39
    %v484 = vunpack.c.h.b16 %v39
    %v485 = vunpack.c.l.b16 %v40
    %v486 = vunpack.c.h.b16 %v40
    %v487 = vunpack.c.l.b16 %v41
    %v488 = vunpack.c.h.b16 %v41
    %v489 = vunpack.c.l.b16 %v42
    %v490 = vunpack.c.h.b16 %v42
    %v491 = vunpack.c.l.b16 %v43
    %v492 = vunpack.c.h.b16 %v43
    %v493 = vunpack.c.l.b16 %v44
    %v494 = vunpack.c.h.b16 %v44
    %v495 = vunpack.c.l.b16 %v45
    %v496 = vunpack.c.h.b16 %v45
    %v497 = vunpack.c.l.b16 %v46
    %v498 = vunpack.c.h.b16 %v46
    %v499 = vunpack.c.l.b16 %v47
    %v500 = vunpack.c.h.b16 %v47
    %v501 = vunpack.c.l.b16 %v48
    %v502 = vunpack.c.h.b16 %v48
    %v503 = vunpack.c.l.b16 %v49
    %v504 = vunpack.c.h.b16 %v49
    %v505 = vunpack.c.l.b16 %v50
    %v506 = vunpack.c.h.b16 %v50
    %v507 = vunpack.c.l.b16 %v51
    %v508 = vunpack.c.h.b16 %v51
    %v509 = vunpack.c.l.b16 %v52
    %v510 = vunpack.c.h.b16 %v52
    %v511 = vunpack.c.l.b16 %v53
    %v512 = vunpack.c.h.b16 %v53
    %v513 = vunpack.c.l.b16 %v54
    %v514 = vunpack.c.h.b16 %v54
    %v515 = vunpack.c.l.b16 %v55
    %v516 = vunpack.c.h.b16 %v55
    %v517 = vunpack.c.l.b16 %v56
    %v518 = vunpack.c.h.b16 %v56
    %v519 = vunpack.c.l.b16 %v57
    %v520 = vunpack.c.h.b16 %v57
    %v521 = vpack.c.b16 %v497, %v473
    %v522 = vpack.c.b16 %v498, %v474
    %v523 = vpack.c.b16 %v499, %v475
    %v524 = vpack.c.b16 %v500, %v476
    %v525 = vpack.c.b16 %v501, %v477
    %v526 = vpack.c.b16 %v502, %v478
    %v527 = vpack.c.b16 %v503, %v479
    %v528 = vpack.c.b16 %v504, %v480
    %v529 = vpack.c.b16 %v505, %v481
    %v530 = vpack.c.b16 %v506, %v482
    %v531 = vpack.c.b16 %v507, %v483
    %v532 = vpack.c.b16 %v508, %v484
    %v533 = vpack.c.b16 %v509, %v485
    %v534 = vpack.c.b16 %v510, %v486
    %v535 = vpack.c.b16 %v511, %v487
    %v536 = vpack.c.b16 %v512, %v488
    %v537 = vpack.c.b16 %v513, %v489
    %v538 = vpack.c.b16 %v514, %v490
    %v539 = vpack.c.b16 %v515, %v491
    %v540 = vpack.c.b16 %v516, %v492
    %v541 = vpack.c.b16 %v517, %v493
    %v542 = vpack.c.b16 %v518, %v494
    %v543 = vpack.c.b16 %v519, %v495
    %v544 = vpack.c.b16 %v520, %v496
    %v953 = vunpack.c.l.b16 %v58
    %v954 = vunpack.c.l.b16 %v59
    %v955 = vunpack.c.l.b16 %v60
    %v956 = vunpack.c.l.b16 %v61
    %v957 = vunpack.c.l.b16 %v62
    %v958 = vunpack.c.l.b16 %v63
    %v959 = vunpack.c.l.b16 %v64
    %v960 = vunpack.c.l.b16 %v65
    %v961 = vunpack.c.l.b16 %v66
    %v962 = vunpack.c.l.b16 %v67
    %v963 = vunpack.c.l.b16 %v68
    %v964 = vunpack.c.l.b16 %v69
    %v965 = vunpack.c.l.b16 %v70
    %v966 = vunpack.c.l.b16 %v71
    %v967 = vunpack.c.l.b16 %v72
    %v968 = vunpack.c.l.b16 %v73
    %v969 = vunpack.c.l.b16 %v74
    %v970 = vunpack.c.l.b16 %v75
    %v971 = vunpack.c.l.b16 %v76
    %v972 = vunpack.c.l.b16 %v77
    %v973 = vunpack.c.l.b16 %v78
    %v974 = vunpack.c.l.b16 %v79
    %v975 = vunpack.c.l.b16 %v80
    %v976 = vunpack.c.l.b16 %v81
    %v977 = vunpack.c.l.b16 %v82
    %v978 = vunpack.c.l.b16 %v83
    %v979 = vunpack.c.l.b16 %v84
    %v980 = vunpack.c.l.b16 %v85
    %v981 = vunpack.c.l.b16 %v86
    %v982 = vunpack.c.l.b16 %v87
    %v983 = vunpack.c.l.b16 %v88
    %v984 = vunpack.c.l.b16 %v89
    %v985 = vunpack.c.l.b16 %v90
    %v986 = vunpack.c.l.b16 %v91
    %v987 = vunpack.c.l.b16 %v92
    %v988 = vunpack.c.l.b16 %v93
    %v989 = vunpack.c.l.b16 %v94
    %v990 = vunpack.c.l.b16 %v95
    %v991 = vunpack.c.l.b16 %v96
    %v992 = vunpack.c.l.b16 %v97
    %v993 = vunpack.c.l.b16 %v98
    %v994 = vunpack.c.l.b16 %v99
    %v995 = vunpack.c.l.b16 %v100
    %v996 = vunpack.c.l.b16 %v101
    %v997 = vunpack.c.l.b16 %v102
    %v998 = vunpack.c.l.b16 %v103
    %v999 = vunpack.c.l.b16 %v104
    %v1000 = vunpack.c.l.b16 %v105
    %v1001 = vunpack.c.l.b16 %v106
    %v1002 = vunpack.c.l.b16 %v107
    %v1003 = vunpack.c.l.b16 %v108
    %v1004 = vunpack.c.l.b16 %v109
    %v1005 = vunpack.c.l.b16 %v110
    %v1006 = vunpack.c.l.b16 %v111
    %v1007 = vunpack.c.l.b16 %v112
    %v1008 = vunpack.c.l.b16 %v113
    %v1009 = vunpack.c.l.b16 %v114
    %v1010 = vunpack.c.l.b16 %v115
    %v1011 = vunpack.c.l.b16 %v116
    %v1012 = vunpack.c.l.b16 %v117
    %v1013 = vunpack.c.l.b16 %v118
    %v1014 = vunpack.c.l.b16 %v119
    %v1015 = vunpack.c.l.b16 %v120
    %v1016 = vunpack.c.l.b16 %v121
    %v1017 = vunpack.c.l.b16 %v122
    %v1018 = vunpack.c.l.b16 %v123
    %v1019 = vunpack.c.l.b16 %v124
    %v1020 = vunpack.c.l.b16 %v125
    %v1021 = vunpack.c.l.b16 %v126
    %v1022 = vunpack.c.l.b16 %v127
    %v1023 = vunpack.c.l.b16 %v128
    %v1024 = vunpack.c.l.b16 %v129
    %v1025 = vunpack.c.l.b16 %v130
    %v1026 = vunpack.c.l.b16 %v131
    %v1027 = vunpack.c.l.b16 %v132
    %v1028 = vunpack.c.l.b16 %v133
    %v1029 = vunpack.c.l.b16 %v134
    %v1030 = vunpack.c.l.b16 %v135
    %v1031 = vunpack.c.l.b16 %v136
    %v1032 = vunpack.c.l.b16 %v137
    %v1033 = vunpack.c.l.b16 %v138
    %v1034 = vunpack.c.l.b16 %v139
    %v1035 = vunpack.c.l.b16 %v140
    %v1036 = vunpack.c.l.b16 %v141
    %v1037 = vunpack.c.l.b16 %v142
    %v1038 = vunpack.c.l.b16 %v143
    %v1039 = vunpack.c.l.b16 %v144
    %v1040 = vunpack.c.l.b16 %v145
    %v1041 = vunpack.c.l.b16 %v146
    %v1042 = vunpack.c.l.b16 %v147
    %v1043 = vunpack.c.l.b16 %v148
    %v1044 = vunpack.c.l.b16 %v149
    %v1045 = vunpack.c.l.b16 %v150
    %v1046 = vunpack.c.l.b16 %v151
    %v1047 = vunpack.c.l.b16 %v152
    %v1048 = vunpack.c.l.b16 %v153
    %v1049 = vunpack.c.l.b16 %v154
    %v1050 = vunpack.c.l.b16 %v155
    %v1051 = vunpack.c.l.b16 %v156
    %v1052 = vunpack.c.l.b16 %v157
    %v1053 = vunpack.c.l.b16 %v158
    %v1054 = vunpack.c.l.b16 %v159
    %v1055 = vunpack.c.l.b16 %v160
    %v1056 = vunpack.c.l.b16 %v161
    %v1057 = vunpack.c.l.b16 %v162
    %v1058 = vunpack.c.l.b16 %v163
    %v1059 = vunpack.c.l.b16 %v164
    %v1060 = vunpack.c.l.b16 %v165
    %v1061 = vunpack.c.l.b16 %v166
    %v1062 = vunpack.c.l.b16 %v167
    %v1063 = vunpack.c.l.b16 %v168
    %v1064 = vunpack.c.l.b16 %v169
    %v1065 = vunpack.c.l.b16 %v170
    %v1066 = vunpack.c.l.b16 %v171
    %v1067 = vunpack.c.l.b16 %v172
    %v1068 = vunpack.c.l.b16 %v173
    %v1069 = vunpack.c.l.b16 %v174
    %v1070 = vunpack.c.l.b16 %v175
    %v1071 = vunpack.c.l.b16 %v176
    %v1072 = vunpack.c.l.b16 %v177
    %v1073 = vunpack.c.l.b16 %v178
    %v1074 = vunpack.c.l.b16 %v179
    %v1075 = vunpack.c.l.b16 %v180
    %v1076 = vunpack.c.l.b16 %v181
    %v1077 = vunpack.c.l.b16 %v182
    %v1078 = vunpack.c.l.b16 %v183
    %v1079 = vunpack.c.l.b16 %v184
    %v1080 = vunpack.c.l.b16 %v185
    %v1081 = vunpack.c.l.b16 %v186
    %v1082 = vunpack.c.l.b16 %v187
    %v1083 = vunpack.c.l.b16 %v188
    %v1084 = vunpack.c.l.b16 %v189
    %v1085 = vunpack.c.l.b16 %v190
    %v1086 = vunpack.c.l.b16 %v191
    %v1087 = vunpack.c.l.b16 %v192
    %v1088 = vunpack.c.l.b16 %v193
    %v1089 = vunpack.c.l.b16 %v194
    %v1090 = vunpack.c.l.b16 %v195
    %v1091 = vunpack.c.l.b16 %v196
    %v1092 = vunpack.c.l.b16 %v197
    %v1093 = vunpack.c.l.b16 %v198
    %v1094 = vunpack.c.l.b16 %v199
    %v1095 = vunpack.c.l.b16 %v200
    %v1096 = vunpack.c.l.b16 %v201
    %v1097 = vunpack.c.l.b16 %v202
    %v1098 = vunpack.c.l.b16 %v203
    %v1099 = vunpack.c.l.b16 %v204
    %v1100 = vunpack.c.l.b16 %v205
    %v1101 = vunpack.c.l.b16 %v206
    %v1102 = vunpack.c.l.b16 %v207
    %v1103 = vunpack.c.l.b16 %v208
    %v1104 = vunpack.c.l.b16 %v209
    %v1105 = vunpack.c.l.b16 %v210
    %v1106 = vunpack.c.l.b16 %v211
    %v1107 = vunpack.c.l.b16 %v212
    %v1108 = vunpack.c.l.b16 %v213
    %v1109 = vunpack.c.l.b16 %v214
    %v1110 = vunpack.c.l.b16 %v215
    %v1111 = vunpack.c.l.b16 %v216
    %v1112 = vunpack.c.l.b16 %v217
    %v1113 = vunpack.c.l.b16 %v218
    %v1114 = vunpack.c.l.b16 %v219
    %v1115 = vunpack.c.l.b16 %v220
    %v1116 = vunpack.c.l.b16 %v221
    %v1117 = vunpack.c.l.b16 %v222
    %v1118 = vunpack.c.l.b16 %v223
    %v1119 = vunpack.c.l.b16 %v224
    %v1120 = vunpack.c.l.b16 %v225
    %v1121 = vunpack.c.l.b16 %v226
    %v1122 = vunpack.c.l.b16 %v227
    %v1123 = vunpack.c.l.b16 %v228
    %v1124 = vunpack.c.l.b16 %v229
    %v1125 = vunpack.c.l.b16 %v230
    %v1126 = vunpack.c.l.b16 %v231
    %v1127 = vunpack.c.l.b16 %v232
    %v1128 = vunpack.c.l.b16 %v233
    %v1129 = vunpack.c.l.b16 %v234
    %v1130 = vunpack.c.l.b16 %v235
    %v1131 = vunpack.c.l.b16 %v236
    %v1132 = vunpack.c.l.b16 %v237
    %v1133 = vunpack.c.l.b16 %v238
    %v1134 = vunpack.c.l.b16 %v239
    %v1135 = vunpack.c.l.b16 %v240
    %v1136 = vunpack.c.l.b16 %v241
    %v1137 = vunpack.c.l.b16 %v242
    %v1138 = vunpack.c.l.b16 %v243
    %v1139 = vunpack.c.l.b16 %v244
    %v1140 = vunpack.c.l.b16 %v245
    %v1141 = vunpack.c.l.b16 %v246
    %v1142 = vunpack.c.l.b16 %v247
    %v1143 = vunpack.c.l.b16 %v248
    %v1144 = vunpack.c.l.b16 %v249
    %v1145 = vunpack.c.l.b16 %v250
    %v1146 = vunpack.c.l.b16 %v251
    %v1147 = vunpack.c.l.b16 %v252
    %v1148 = vunpack.c.l.b16 %v253
    %v1149 = vunpack.c.l.b16 %v254
    %v1150 = vunpack.c.l.b16 %v255
    %v1151 = vunpack.c.l.b16 %v256
    %v1152 = vunpack.c.l.b16 %v257
    %v1153 = vunpack.c.l.b16 %v258
    %v1154 = vunpack.c.l.b16 %v259
    %v1155 = vunpack.c.l.b16 %v260
    %v1156 = vunpack.c.l.b16 %v261
    %v1157 = vunpack.c.l.b16 %v262
    %v1158 = vunpack.c.l.b16 %v263
    %v1159 = vunpack.c.l.b16 %v264
    %v1160 = vunpack.c.l.b16 %v265
    %v1161 = vunpack.c.l.b16 %v266
    %v1162 = vunpack.c.l.b16 %v267
    %v1163 = vunpack.c.l.b16 %v268
    %v1164 = vunpack.c.l.b16 %v269
    %v1165 = vunpack.c.l.b16 %v270
    %v1166 = vunpack.c.l.b16 %v271
    %v1167 = vunpack.c.l.b16 %v272
    %v1168 = vunpack.c.l.b16 %v273
    %v1169 = vunpack.c.l.b16 %v274
    %v1170 = vunpack.c.l.b16 %v275
    %v1171 = vunpack.c.l.b16 %v276
    %v1172 = vunpack.c.l.b16 %v277
    %v1173 = vunpack.c.l.b16 %v278
    %v1174 = vunpack.c.l.b16 %v279
    %v1175 = vunpack.c.l.b16 %v280
    %v1176 = vunpack.c.l.b16 %v281
    %v1177 = vunpack.c.l.b16 %v282
    %v1178 = vunpack.c.l.b16 %v283
    %v1179 = vunpack.c.l.b16 %v284
    %v1180 = vunpack.c.l.b16 %v285
    %v1181 = vunpack.c.l.b16 %v286
    %v1182 = vunpack.c.l.b16 %v287
    %v1183 = vunpack.c.l.b16 %v288
    %v1184 = vunpack.c.l.b16 %v289
    %v1185 = vunpack.c.l.b16 %v290
    %v1186 = vunpack.c.l.b16 %v291
    %v1187 = vunpack.c.l.b16 %v292
    %v1188 = vunpack.c.l.b16 %v293
    %v1189 = vunpack.c.l.b16 %v294
    %v1190 = vunpack.c.l.b16 %v295
    %v1191 = vunpack.c.l.b16 %v296
    %v1192 = vunpack.c.l.b16 %v297
    %v1193 = vunpack.c.l.b16 %v298
    %v1194 = vunpack.c.l.b16 %v299
    %v1195 = vunpack.c.l.b16 %v300
    %v1196 = vunpack.c.l.b16 %v301
    %v1197 = vunpack.c.l.b16 %v302
    %v1198 = vunpack.c.l.b16 %v303
    %v1199 = vunpack.c.l.b16 %v304
    %v1200 = vunpack.c.l.b16 %v305
    %v1201 = vunpack.c.l.b16 %v306
    %v1202 = vunpack.c.l.b16 %v307
    %v1203 = vunpack.c.l.b16 %v308
    %v1204 = vunpack.c.l.b16 %v309
    %v1205 = vunpack.c.l.b16 %v310
    %v1206 = vunpack.c.l.b16 %v311
    %v1207 = vunpack.c.l.b16 %v312
    %v1208 = vunpack.c.l.b16 %v313
    %v1209 = vunpack.c.l.b16 %v314
    %v1210 = vunpack.c.l.b16 %v315
    %v1211 = vunpack.c.l.b16 %v316
    %v1212 = vunpack.c.l.b16 %v317
    %v1213 = vunpack.c.l.b16 %v318
    %v1214 = vunpack.c.l.b16 %v319
    %v1215 = vunpack.c.l.b16 %v320
    %v1216 = vunpack.c.l.b16 %v321
    %v1217 = vunpack.c.l.b16 %v322
    %v1218 = vunpack.c.l.b16 %v323
    %v1219 = vunpack.c.l.b16 %v324
    %v1220 = vunpack.c.l.b16 %v325
    %v1221 = vunpack.c.l.b16 %v326
    %v1222 = vunpack.c.l.b16 %v327
    %v1223 = vunpack.c.l.b16 %v328
    %v1224 = vunpack.c.l.b16 %v329
    %v1225 = vunpack.c.l.b16 %v330
    %v1226 = vunpack.c.l.b16 %v331
    %v1227 = vunpack.c.l.b16 %v332
    %v1228 = vunpack.c.l.b16 %v333
    %v1229 = vunpack.c.l.b16 %v334
    %v1230 = vunpack.c.l.b16 %v335
    %v1231 = vunpack.c.l.b16 %v336
    %v1232 = vunpack.c.l.b16 %v337
    %v1233 = vunpack.c.l.b16 %v338
    %v1234 = vunpack.c.l.b16 %v339
    %v1235 = vunpack.c.l.b16 %v340
    %v1236 = vunpack.c.l.b16 %v341
    %v1237 = vunpack.c.l.b16 %v342
    %v1238 = vunpack.c.l.b16 %v343
    %v1239 = vunpack.c.l.b16 %v344
    %v1240 = vunpack.c.l.b16 %v345
    %v1241 = vunpack.c.l.b16 %v346
    %v1242 = vunpack.c.l.b16 %v347
    %v1243 = vunpack.c.l.b16 %v348
    %v1244 = vunpack.c.l.b16 %v349
    %v1245 = vunpack.c.l.b16 %v350
    %v1246 = vunpack.c.l.b16 %v351
    %v1247 = vunpack.c.l.b16 %v352
    %v1248 = vunpack.c.l.b16 %v353
    %v1249 = vunpack.c.l.b16 %v354
    %v1250 = vunpack.c.l.b16 %v355
    %v1251 = vunpack.c.l.b16 %v356
    %v1252 = vunpack.c.l.b16 %v357
    %v1253 = vunpack.c.l.b16 %v358
    %v1254 = vunpack.c.l.b16 %v359
    %v1255 = vunpack.c.l.b16 %v360
    %v1256 = vunpack.c.l.b16 %v361
    %v1257 = vunpack.c.l.b16 %v362
    %v1258 = vunpack.c.l.b16 %v363
    %v1259 = vunpack.c.l.b16 %v364
    %v1260 = vunpack.c.l.b16 %v365
    %v1261 = vunpack.c.l.b16 %v366
    %v1262 = vunpack.c.l.b16 %v367
    %v1263 = vunpack.c.l.b16 %v368
    %v1264 = vunpack.c.l.b16 %v369
    %v1265 = vunpack.c.l.b16 %v370
    %v1266 = vunpack.c.l.b16 %v371
    %v1267 = vunpack.c.l.b16 %v372
    %v1268 = vunpack.c.l.b16 %v373
    %v1269 = vunpack.c.l.b16 %v374
    %v1270 = vunpack.c.l.b16 %v375
    %v1271 = vunpack.c.l.b16 %v376
    %v1272 = vunpack.c.l.b16 %v377
    %v1273 = vunpack.c.l.b16 %v378
    %v1274 = vunpack.c.l.b16 %v379
    %v1275 = vunpack.c.l.b16 %v380
    %v1276 = vunpack.c.l.b16 %v381
    %v1277 = vunpack.c.l.b16 %v382
    %v1278 = vunpack.c.l.b16 %v383
    %v1279 = vunpack.c.l.b16 %v384
    %v1280 = vunpack.c.l.b16 %v385
    %v1281 = vunpack.c.l.b16 %v386
    %v1282 = vunpack.c.l.b16 %v387
    %v1283 = vunpack.c.l.b16 %v388
    %v1284 = vunpack.c.l.b16 %v389
    %v1285 = vunpack.c.l.b16 %v390
    %v1286 = vunpack.c.l.b16 %v391
    %v1287 = vunpack.c.l.b16 %v392
    %v1288 = vunpack.c.l.b16 %v393
    %v1289 = vunpack.c.l.b16 %v394
    %v1290 = vunpack.c.l.b16 %v395
    %v1291 = vunpack.c.l.b16 %v396
    %v1292 = vunpack.c.l.b16 %v397
    %v1293 = vunpack.c.l.b16 %v398
    %v1294 = vunpack.c.l.b16 %v399
    %v1295 = vunpack.c.l.b16 %v400
    %v1296 = vunpack.c.l.b16 %v401
    %v1297 = vunpack.c.l.b16 %v402
    %v1298 = vunpack.c.l.b16 %v403
    %v1299 = vunpack.c.l.b16 %v404
    %v1300 = vunpack.c.l.b16 %v405
    %v1301 = vunpack.c.l.b16 %v406
    %v1302 = vunpack.c.l.b16 %v407
    %v1303 = vunpack.c.l.b16 %v408
    %v1304 = vunpack.c.l.b16 %v409
    %v1305 = vunpack.c.l.b16 %v410
    %v1306 = vunpack.c.l.b16 %v411
    %v1307 = vunpack.c.l.b16 %v412
    %v1308 = vunpack.c.l.b16 %v413
    %v1309 = vunpack.c.l.b16 %v414
    %v1310 = vunpack.c.l.b16 %v415
    %v1311 = vunpack.c.l.b16 %v416
    %v1312 = vunpack.c.l.b16 %v417
    %v1313 = vunpack.c.l.b16 %v418
    %v1314 = vunpack.c.l.b16 %v419
    %v1315 = vunpack.c.l.b16 %v420
    %v1316 = vunpack.c.l.b16 %v421
    %v1317 = vunpack.c.l.b16 %v422
    %v1318 = vunpack.c.l.b16 %v423
    %v1319 = vunpack.c.l.b16 %v424
    %v1320 = vunpack.c.l.b16 %v425
    %v1321 = vunpack.c.l.b16 %v426
    %v1322 = vunpack.c.l.b16 %v427
    %v1323 = vunpack.c.l.b16 %v428
    %v1324 = vunpack.c.l.b16 %v429
    %v1325 = vunpack.c.l.b16 %v430
    %v1326 = vunpack.c.l.b16 %v431
    %v1327 = vunpack.c.l.b16 %v432
    %v1328 = vunpack.c.l.b16 %v433
    %v1329 = vunpack.c.l.b16 %v434
    %v1330 = vunpack.c.l.b16 %v435
    %v1331 = vunpack.c.l.b16 %v436
    %v1332 = vunpack.c.l.b16 %v437
    %v1333 = vunpack.c.l.b16 %v438
    %v1334 = vunpack.c.l.b16 %v439
    %v1335 = vunpack.c.l.b16 %v440
    %v1336 = vunpack.c.l.b16 %v441
    %v1337 = vpack.c.b16 %v954, %v953
    %v1338 = vpack.c.b16 %v956, %v955
    %v1339 = vpack.c.b16 %v958, %v957
    %v1340 = vpack.c.b16 %v960, %v959
    %v1341 = vpack.c.b16 %v962, %v961
    %v1342 = vpack.c.b16 %v964, %v963
    %v1343 = vpack.c.b16 %v966, %v965
    %v1344 = vpack.c.b16 %v968, %v967
    %v1345 = vpack.c.b16 %v970, %v969
    %v1346 = vpack.c.b16 %v972, %v971
    %v1347 = vpack.c.b16 %v974, %v973
    %v1348 = vpack.c.b16 %v976, %v975
    %v1349 = vpack.c.b16 %v978, %v977
    %v1350 = vpack.c.b16 %v980, %v979
    %v1351 = vpack.c.b16 %v982, %v981
    %v1352 = vpack.c.b16 %v984, %v983
    %v1353 = vpack.c.b16 %v986, %v985
    %v1354 = vpack.c.b16 %v988, %v987
    %v1355 = vpack.c.b16 %v990, %v989
    %v1356 = vpack.c.b16 %v992, %v991
    %v1357 = vpack.c.b16 %v994, %v993
    %v1358 = vpack.c.b16 %v996, %v995
    %v1359 = vpack.c.b16 %v998, %v997
    %v1360 = vpack.c.b16 %v1000, %v999
    %v1361 = vpack.c.b16 %v1002, %v1001
    %v1362 = vpack.c.b16 %v1004, %v1003
    %v1363 = vpack.c.b16 %v1006, %v1005
    %v1364 = vpack.c.b16 %v1008, %v1007
    %v1365 = vpack.c.b16 %v1010, %v1009
    %v1366 = vpack.c.b16 %v1012, %v1011
    %v1367 = vpack.c.b16 %v1014, %v1013
    %v1368 = vpack.c.b16 %v1016, %v1015
    %v1369 = vpack.c.b16 %v1018, %v1017
    %v1370 = vpack.c.b16 %v1020, %v1019
    %v1371 = vpack.c.b16 %v1022, %v1021
    %v1372 = vpack.c.b16 %v1024, %v1023
    %v1373 = vpack.c.b16 %v1026, %v1025
    %v1374 = vpack.c.b16 %v1028, %v1027
    %v1375 = vpack.c.b16 %v1030, %v1029
    %v1376 = vpack.c.b16 %v1032, %v1031
    %v1377 = vpack.c.b16 %v1034, %v1033
    %v1378 = vpack.c.b16 %v1036, %v1035
    %v1379 = vpack.c.b16 %v1038, %v1037
    %v1380 = vpack.c.b16 %v1040, %v1039
    %v1381 = vpack.c.b16 %v1042, %v1041
    %v1382 = vpack.c.b16 %v1044, %v1043
    %v1383 = vpack.c.b16 %v1046, %v1045
    %v1384 = vpack.c.b16 %v1048, %v1047
    %v1385 = vpack.c.b16 %v1050, %v1049
    %v1386 = vpack.c.b16 %v1052, %v1051
    %v1387 = vpack.c.b16 %v1054, %v1053
    %v1388 = vpack.c.b16 %v1056, %v1055
    %v1389 = vpack.c.b16 %v1058, %v1057
    %v1390 = vpack.c.b16 %v1060, %v1059
    %v1391 = vpack.c.b16 %v1062, %v1061
    %v1392 = vpack.c.b16 %v1064, %v1063
    %v1393 = vpack.c.b16 %v1066, %v1065
    %v1394 = vpack.c.b16 %v1068, %v1067
    %v1395 = vpack.c.b16 %v1070, %v1069
    %v1396 = vpack.c.b16 %v1072, %v1071
    %v1397 = vpack.c.b16 %v1074, %v1073
    %v1398 = vpack.c.b16 %v1076, %v1075
    %v1399 = vpack.c.b16 %v1078, %v1077
    %v1400 = vpack.c.b16 %v1080, %v1079
    %v1401 = vpack.c.b16 %v1082, %v1081
    %v1402 = vpack.c.b16 %v1084, %v1083
    %v1403 = vpack.c.b16 %v1086, %v1085
    %v1404 = vpack.c.b16 %v1088, %v1087
    %v1405 = vpack.c.b16 %v1090, %v1089
    %v1406 = vpack.c.b16 %v1092, %v1091
    %v1407 = vpack.c.b16 %v1094, %v1093
    %v1408 = vpack.c.b16 %v1096, %v1095
    %v1409 = vpack.c.b16 %v1098, %v1097
    %v1410 = vpack.c.b16 %v1100, %v1099
    %v1411 = vpack.c.b16 %v1102, %v1101
    %v1412 = vpack.c.b16 %v1104, %v1103
    %v1413 = vpack.c.b16 %v1106, %v1105
    %v1414 = vpack.c.b16 %v1108, %v1107
    %v1415 = vpack.c.b16 %v1110, %v1109
    %v1416 = vpack.c.b16 %v1112, %v1111
    %v1417 = vpack.c.b16 %v1114, %v1113
    %v1418 = vpack.c.b16 %v1116, %v1115
    %v1419 = vpack.c.b16 %v1118, %v1117
    %v1420 = vpack.c.b16 %v1120, %v1119
    %v1421 = vpack.c.b16 %v1122, %v1121
    %v1422 = vpack.c.b16 %v1124, %v1123
    %v1423 = vpack.c.b16 %v1126, %v1125
    %v1424 = vpack.c.b16 %v1128, %v1127
    %v1425 = vpack.c.b16 %v1130, %v1129
    %v1426 = vpack.c.b16 %v1132, %v1131
    %v1427 = vpack.c.b16 %v1134, %v1133
    %v1428 = vpack.c.b16 %v1136, %v1135
    %v1429 = vpack.c.b16 %v1138, %v1137
    %v1430 = vpack.c.b16 %v1140, %v1139
    %v1431 = vpack.c.b16 %v1142, %v1141
    %v1432 = vpack.c.b16 %v1144, %v1143
    %v1433 = vpack.c.b16 %v1146, %v1145
    %v1434 = vpack.c.b16 %v1148, %v1147
    %v1435 = vpack.c.b16 %v1150, %v1149
    %v1436 = vpack.c.b16 %v1152, %v1151
    %v1437 = vpack.c.b16 %v1154, %v1153
    %v1438 = vpack.c.b16 %v1156, %v1155
    %v1439 = vpack.c.b16 %v1158, %v1157
    %v1440 = vpack.c.b16 %v1160, %v1159
    %v1441 = vpack.c.b16 %v1162, %v1161
    %v1442 = vpack.c.b16 %v1164, %v1163
    %v1443 = vpack.c.b16 %v1166, %v1165
    %v1444 = vpack.c.b16 %v1168, %v1167
    %v1445 = vpack.c.b16 %v1170, %v1169
    %v1446 = vpack.c.b16 %v1172, %v1171
    %v1447 = vpack.c.b16 %v1174, %v1173
    %v1448 = vpack.c.b16 %v1176, %v1175
    %v1449 = vpack.c.b16 %v1178, %v1177
    %v1450 = vpack.c.b16 %v1180, %v1179
    %v1451 = vpack.c.b16 %v1182, %v1181
    %v1452 = vpack.c.b16 %v1184, %v1183
    %v1453 = vpack.c.b16 %v1186, %v1185
    %v1454 = vpack.c.b16 %v1188, %v1187
    %v1455 = vpack.c.b16 %v1190, %v1189
    %v1456 = vpack.c.b16 %v1192, %v1191
    %v1457 = vpack.c.b16 %v1194, %v1193
    %v1458 = vpack.c.b16 %v1196, %v1195
    %v1459 = vpack.c.b16 %v1198, %v1197
    %v1460 = vpack.c.b16 %v1200, %v1199
    %v1461 = vpack.c.b16 %v1202, %v1201
    %v1462 = vpack.c.b16 %v1204, %v1203
    %v1463 = vpack.c.b16 %v1206, %v1205
    %v1464 = vpack.c.b16 %v1208, %v1207
    %v1465 = vpack.c.b16 %v1210, %v1209
    %v1466 = vpack.c.b16 %v1212, %v1211
    %v1467 = vpack.c.b16 %v1214, %v1213
    %v1468 = vpack.c.b16 %v1216, %v1215
    %v1469 = vpack.c.b16 %v1218, %v1217
    %v1470 = vpack.c.b16 %v1220, %v1219
    %v1471 = vpack.c.b16 %v1222, %v1221
    %v1472 = vpack.c.b16 %v1224, %v1223
    %v1473 = vpack.c.b16 %v1226, %v1225
    %v1474 = vpack.c.b16 %v1228, %v1227
    %v1475 = vpack.c.b16 %v1230, %v1229
    %v1476 = vpack.c.b16 %v1232, %v1231
    %v1477 = vpack.c.b16 %v1234, %v1233
    %v1478 = vpack.c.b16 %v1236, %v1235
    %v1479 = vpack.c.b16 %v1238, %v1237
    %v1480 = vpack.c.b16 %v1240, %v1239
    %v1481 = vpack.c.b16 %v1242, %v1241
    %v1482 = vpack.c.b16 %v1244, %v1243
    %v1483 = vpack.c.b16 %v1246, %v1245
    %v1484 = vpack.c.b16 %v1248, %v1247
    %v1485 = vpack.c.b16 %v1250, %v1249
    %v1486 = vpack.c.b16 %v1252, %v1251
    %v1487 = vpack.c.b16 %v1254, %v1253
    %v1488 = vpack.c.b16 %v1256, %v1255
    %v1489 = vpack.c.b16 %v1258, %v1257
    %v1490 = vpack.c.b16 %v1260, %v1259
    %v1491 = vpack.c.b16 %v1262, %v1261
    %v1492 = vpack.c.b16 %v1264, %v1263
    %v1493 = vpack.c.b16 %v1266, %v1265
    %v1494 = vpack.c.b16 %v1268, %v1267
    %v1495 = vpack.c.b16 %v1270, %v1269
    %v1496 = vpack.c.b16 %v1272, %v1271
    %v1497 = vpack.c.b16 %v1274, %v1273
    %v1498 = vpack.c.b16 %v1276, %v1275
    %v1499 = vpack.c.b16 %v1278, %v1277
    %v1500 = vpack.c.b16 %v1280, %v1279
    %v1501 = vpack.c.b16 %v1282, %v1281
    %v1502 = vpack.c.b16 %v1284, %v1283
    %v1503 = vpack.c.b16 %v1286, %v1285
    %v1504 = vpack.c.b16 %v1288, %v1287
    %v1505 = vpack.c.b16 %v1290, %v1289
    %v1506 = vpack.c.b16 %v1292, %v1291
    %v1507 = vpack.c.b16 %v1294, %v1293
    %v1508 = vpack.c.b16 %v1296, %v1295
    %v1509 = vpack.c.b16 %v1298, %v1297
    %v1510 = vpack.c.b16 %v1300, %v1299
    %v1511 = vpack.c.b16 %v1302, %v1301
    %v1512 = vpack.c.b16 %v1304, %v1303
    %v1513 = vpack.c.b16 %v1306, %v1305
    %v1514 = vpack.c.b16 %v1308, %v1307
    %v1515 = vpack.c.b16 %v1310, %v1309
    %v1516 = vpack.c.b16 %v1312, %v1311
    %v1517 = vpack.c.b16 %v1314, %v1313
    %v1518 = vpack.c.b16 %v1316, %v1315
    %v1519 = vpack.c.b16 %v1318, %v1317
    %v1520 = vpack.c.b16 %v1320, %v1319
    %v1521 = vpack.c.b16 %v1322, %v1321
    %v1522 = vpack.c.b16 %v1324, %v1323
    %v1523 = vpack.c.b16 %v1326, %v1325
    %v1524 = vpack.c.b16 %v1328, %v1327
    %v1525 = vpack.c.b16 %v1330, %v1329
    %v1526 = vpack.c.b16 %v1332, %v1331
    %v1527 = vpack.c.b16 %v1334, %v1333
    %v1528 = vpack.c.b16 %v1336, %v1335
    %1721 = vmatprep.subr.bf16.mxu0 0
    %1722 = vmatpush1.bf16.msra.mxu0 %v1337
    %1723 = vmatprep.subr.bf16.mxu0 0
    %1724 = vmatpush1.bf16.msra.mxu0 %v1338
    %1725 = vmatprep.subr.bf16.mxu0 0
    %1726 = vmatpush1.bf16.msra.mxu0 %v1339
    %1727 = vmatprep.subr.bf16.mxu0 0
    %1728 = vmatpush1.bf16.msra.mxu0 %v1340
    %1729 = vmatprep.subr.bf16.mxu0 0
    %1730 = vmatpush1.bf16.msra.mxu0 %v1341
    %1731 = vmatprep.subr.bf16.mxu0 0
    %1732 = vmatpush1.bf16.msra.mxu0 %v1342
    %1733 = vmatprep.subr.bf16.mxu0 0
    %1734 = vmatpush1.bf16.msra.mxu0 %v1343
    %1735 = vmatprep.subr.bf16.mxu0 0
    %1736 = vmatpush1.bf16.msra.mxu0 %v1344
    %1737 = vmatprep.subr.bf16.mxu0 0
    %1738 = vmatpush1.bf16.msra.mxu0 %v1345
    %1739 = vmatprep.subr.bf16.mxu0 0
    %1740 = vmatpush1.bf16.msra.mxu0 %v1346
    %1741 = vmatprep.subr.bf16.mxu0 0
    %1742 = vmatpush1.bf16.msra.mxu0 %v1347
    %1743 = vmatprep.subr.bf16.mxu0 0
    %1744 = vmatpush1.bf16.msra.mxu0 %v1348
    %1745 = vmatprep.subr.bf16.mxu0 0
    %1746 = vmatpush1.bf16.msra.mxu0 %v1349
    %1747 = vmatprep.subr.bf16.mxu0 0
    %1748 = vmatpush1.bf16.msra.mxu0 %v1350
    %1749 = vmatprep.subr.bf16.mxu0 0
    %1750 = vmatpush1.bf16.msra.mxu0 %v1351
    %1751 = vmatprep.subr.bf16.mxu0 0
    %1752 = vmatpush1.bf16.msra.mxu0 %v1352
    %1753 = vmatprep.mubr.bf16.mxu0 %v522
    %1754 = vmatmul.mubr.bf16.gmra.mrb[0].mxu0 %v521
    %v1755 = vpop.f32.mrb[0].mxu0
    %v1756 = vadd.f32 %v447, %v1755
    %v1757 = vpop.f32.mrb[0].mxu0
    %v1758 = vpop.f32.mrb[0].mxu0
    %v1759 = vadd.f32 %v447, %v1758
    %v1760 = vpop.f32.mrb[0].mxu0
    %1761 = vdwg.mxu0
    %1762 = vmatprep.subr.bf16.mxu0 0
    %1763 = vmatpush1.bf16.msra.mxu0 %v1353
    %1764 = vmatprep.subr.bf16.mxu0 0
    %1765 = vmatpush1.bf16.msra.mxu0 %v1354
    %1766 = vmatprep.subr.bf16.mxu0 0
    %1767 = vmatpush1.bf16.msra.mxu0 %v1355
    %1768 = vmatprep.subr.bf16.mxu0 0
    %1769 = vmatpush1.bf16.msra.mxu0 %v1356
    %1770 = vmatprep.subr.bf16.mxu0 0
    %1771 = vmatpush1.bf16.msra.mxu0 %v1357
    %1772 = vmatprep.subr.bf16.mxu0 0
    %1773 = vmatpush1.bf16.msra.mxu0 %v1358
    %1774 = vmatprep.subr.bf16.mxu0 0
    %1775 = vmatpush1.bf16.msra.mxu0 %v1359
    %1776 = vmatprep.subr.bf16.mxu0 0
    %1777 = vmatpush1.bf16.msra.mxu0 %v1360
    %1778 = vmatprep.subr.bf16.mxu0 0
    %1779 = vmatpush1.bf16.msra.mxu0 %v1361
    %1780 = vmatprep.subr.bf16.mxu0 0
    %1781 = vmatpush1.bf16.msra.mxu0 %v1362
    %1782 = vmatprep.subr.bf16.mxu0 0
    %1783 = vmatpush1.bf16.msra.mxu0 %v1363
    %1784 = vmatprep.subr.bf16.mxu0 0
    %1785 = vmatpush1.bf16.msra.mxu0 %v1364
    %1786 = vmatprep.subr.bf16.mxu0 0
    %1787 = vmatpush1.bf16.msra.mxu0 %v1365
    %1788 = vmatprep.subr.bf16.mxu0 0
    %1789 = vmatpush1.bf16.msra.mxu0 %v1366
    %1790 = vmatprep.subr.bf16.mxu0 0
    %1791 = vmatpush1.bf16.msra.mxu0 %v1367
    %1792 = vmatprep.subr.bf16.mxu0 0
    %1793 = vmatpush1.bf16.msra.mxu0 %v1368
    %1794 = vmatprep.mubr.bf16.mxu0 %v524
    %1795 = vmatmul.mubr.bf16.gmra.mrb[0].mxu0 %v523
    %v1796 = vpop.f32.mrb[0].mxu0
    %v1797 = vadd.f32 %v1756, %v1796
    %v1798 = vpop.f32.mrb[0].mxu0
    %v1799 = vpop.f32.mrb[0].mxu0
    %v1800 = vadd.f32 %v1759, %v1799
    %v1801 = vpop.f32.mrb[0].mxu0
    %1802 = vdwg.mxu0
    %1803 = vmatprep.subr.bf16.mxu0 0
    %1804 = vmatpush1.bf16.msra.mxu0 %v1369
    %1805 = vmatprep.subr.bf16.mxu0 0
    %1806 = vmatpush1.bf16.msra.mxu0 %v1370
    %1807 = vmatprep.subr.bf16.mxu0 0
    %1808 = vmatpush1.bf16.msra.mxu0 %v1371
    %1809 = vmatprep.subr.bf16.mxu0 0
    %1810 = vmatpush1.bf16.msra.mxu0 %v1372
    %1811 = vmatprep.subr.bf16.mxu0 0
    %1812 = vmatpush1.bf16.msra.mxu0 %v1373
    %1813 = vmatprep.subr.bf16.mxu0 0
    %1814 = vmatpush1.bf16.msra.mxu0 %v1374
    %1815 = vmatprep.subr.bf16.mxu0 0
    %1816 = vmatpush1.bf16.msra.mxu0 %v1375
    %1817 = vmatprep.subr.bf16.mxu0 0
    %1818 = vmatpush1.bf16.msra.mxu0 %v1376
    %1819 = vmatprep.subr.bf16.mxu0 0
    %1820 = vmatpush1.bf16.msra.mxu0 %v1377
    %1821 = vmatprep.subr.bf16.mxu0 0
    %1822 = vmatpush1.bf16.msra.mxu0 %v1378
    %1823 = vmatprep.subr.bf16.mxu0 0
    %1824 = vmatpush1.bf16.msra.mxu0 %v1379
    %1825 = vmatprep.subr.bf16.mxu0 0
    %1826 = vmatpush1.bf16.msra.mxu0 %v1380
    %1827 = vmatprep.subr.bf16.mxu0 0
    %1828 = vmatpush1.bf16.msra.mxu0 %v1381
    %1829 = vmatprep.subr.bf16.mxu0 0
    %1830 = vmatpush1.bf16.msra.mxu0 %v1382
    %1831 = vmatprep.subr.bf16.mxu0 0
    %1832 = vmatpush1.bf16.msra.mxu0 %v1383
    %1833 = vmatprep.subr.bf16.mxu0 0
    %1834 = vmatpush1.bf16.msra.mxu0 %v1384
    %1835 = vmatprep.mubr.bf16.mxu0 %v526
    %1836 = vmatmul.mubr.bf16.gmra.mrb[0].mxu0 %v525
    %v1837 = vpop.f32.mrb[0].mxu0
    %v1838 = vadd.f32 %v1797, %v1837
    %v1839 = vpop.f32.mrb[0].mxu0
    %v1840 = vpop.f32.mrb[0].mxu0
    %v1841 = vadd.f32 %v1800, %v1840
    %v1842 = vpop.f32.mrb[0].mxu0
    %1843 = vdwg.mxu0
    %1844 = vmatprep.subr.bf16.mxu0 0
    %1845 = vmatpush1.bf16.msra.mxu0 %v1385
    %1846 = vmatprep.subr.bf16.mxu0 0
    %1847 = vmatpush1.bf16.msra.mxu0 %v1386
    %1848 = vmatprep.subr.bf16.mxu0 0
    %1849 = vmatpush1.bf16.msra.mxu0 %v1387
    %1850 = vmatprep.subr.bf16.mxu0 0
    %1851 = vmatpush1.bf16.msra.mxu0 %v1388
    %1852 = vmatprep.subr.bf16.mxu0 0
    %1853 = vmatpush1.bf16.msra.mxu0 %v1389
    %1854 = vmatprep.subr.bf16.mxu0 0
    %1855 = vmatpush1.bf16.msra.mxu0 %v1390
    %1856 = vmatprep.subr.bf16.mxu0 0
    %1857 = vmatpush1.bf16.msra.mxu0 %v1391
    %1858 = vmatprep.subr.bf16.mxu0 0
    %1859 = vmatpush1.bf16.msra.mxu0 %v1392
    %1860 = vmatprep.subr.bf16.mxu0 0
    %1861 = vmatpush1.bf16.msra.mxu0 %v1393
    %1862 = vmatprep.subr.bf16.mxu0 0
    %1863 = vmatpush1.bf16.msra.mxu0 %v1394
    %1864 = vmatprep.subr.bf16.mxu0 0
    %1865 = vmatpush1.bf16.msra.mxu0 %v1395
    %1866 = vmatprep.subr.bf16.mxu0 0
    %1867 = vmatpush1.bf16.msra.mxu0 %v1396
    %1868 = vmatprep.subr.bf16.mxu0 0
    %1869 = vmatpush1.bf16.msra.mxu0 %v1397
    %1870 = vmatprep.subr.bf16.mxu0 0
    %1871 = vmatpush1.bf16.msra.mxu0 %v1398
    %1872 = vmatprep.subr.bf16.mxu0 0
    %1873 = vmatpush1.bf16.msra.mxu0 %v1399
    %1874 = vmatprep.subr.bf16.mxu0 0
    %1875 = vmatpush1.bf16.msra.mxu0 %v1400
    %1876 = vmatprep.mubr.bf16.mxu0 %v528
    %1877 = vmatmul.mubr.bf16.gmra.mrb[0].mxu0 %v527
    %v1878 = vpop.f32.mrb[0].mxu0
    %v1879 = vadd.f32 %v1838, %v1878
    %v1880 = vpop.f32.mrb[0].mxu0
    %v1881 = vpop.f32.mrb[0].mxu0
    %v1882 = vadd.f32 %v1841, %v1881
    %v1883 = vpop.f32.mrb[0].mxu0
    %1884 = vdwg.mxu0
    %1885 = vmatprep.subr.bf16.mxu0 0
    %1886 = vmatpush1.bf16.msra.mxu0 %v1401
    %1887 = vmatprep.subr.bf16.mxu0 0
    %1888 = vmatpush1.bf16.msra.mxu0 %v1402
    %1889 = vmatprep.subr.bf16.mxu0 0
    %1890 = vmatpush1.bf16.msra.mxu0 %v1403
    %1891 = vmatprep.subr.bf16.mxu0 0
    %1892 = vmatpush1.bf16.msra.mxu0 %v1404
    %1893 = vmatprep.subr.bf16.mxu0 0
    %1894 = vmatpush1.bf16.msra.mxu0 %v1405
    %1895 = vmatprep.subr.bf16.mxu0 0
    %1896 = vmatpush1.bf16.msra.mxu0 %v1406
    %1897 = vmatprep.subr.bf16.mxu0 0
    %1898 = vmatpush1.bf16.msra.mxu0 %v1407
    %1899 = vmatprep.subr.bf16.mxu0 0
    %1900 = vmatpush1.bf16.msra.mxu0 %v1408
    %1901 = vmatprep.subr.bf16.mxu0 0
    %1902 = vmatpush1.bf16.msra.mxu0 %v1409
    %1903 = vmatprep.subr.bf16.mxu0 0
    %1904 = vmatpush1.bf16.msra.mxu0 %v1410
    %1905 = vmatprep.subr.bf16.mxu0 0
    %1906 = vmatpush1.bf16.msra.mxu0 %v1411
    %1907 = vmatprep.subr.bf16.mxu0 0
    %1908 = vmatpush1.bf16.msra.mxu0 %v1412
    %1909 = vmatprep.subr.bf16.mxu0 0
    %1910 = vmatpush1.bf16.msra.mxu0 %v1413
    %1911 = vmatprep.subr.bf16.mxu0 0
    %1912 = vmatpush1.bf16.msra.mxu0 %v1414
    %1913 = vmatprep.subr.bf16.mxu0 0
    %1914 = vmatpush1.bf16.msra.mxu0 %v1415
    %1915 = vmatprep.subr.bf16.mxu0 0
    %1916 = vmatpush1.bf16.msra.mxu0 %v1416
    %1917 = vmatprep.mubr.bf16.mxu0 %v530
    %1918 = vmatmul.mubr.bf16.gmra.mrb[0].mxu0 %v529
    %v1919 = vpop.f32.mrb[0].mxu0
    %v1920 = vadd.f32 %v1879, %v1919
    %v1921 = vpop.f32.mrb[0].mxu0
    %v1922 = vpop.f32.mrb[0].mxu0
    %v1923 = vadd.f32 %v1882, %v1922
    %v1924 = vpop.f32.mrb[0].mxu0
    %1925 = vdwg.mxu0
    %1926 = vmatprep.subr.bf16.mxu0 0
    %1927 = vmatpush1.bf16.msra.mxu0 %v1417
    %1928 = vmatprep.subr.bf16.mxu0 0
    %1929 = vmatpush1.bf16.msra.mxu0 %v1418
    %1930 = vmatprep.subr.bf16.mxu0 0
    %1931 = vmatpush1.bf16.msra.mxu0 %v1419
    %1932 = vmatprep.subr.bf16.mxu0 0
    %1933 = vmatpush1.bf16.msra.mxu0 %v1420
    %1934 = vmatprep.subr.bf16.mxu0 0
    %1935 = vmatpush1.bf16.msra.mxu0 %v1421
    %1936 = vmatprep.subr.bf16.mxu0 0
    %1937 = vmatpush1.bf16.msra.mxu0 %v1422
    %1938 = vmatprep.subr.bf16.mxu0 0
    %1939 = vmatpush1.bf16.msra.mxu0 %v1423
    %1940 = vmatprep.subr.bf16.mxu0 0
    %1941 = vmatpush1.bf16.msra.mxu0 %v1424
    %1942 = vmatprep.subr.bf16.mxu0 0
    %1943 = vmatpush1.bf16.msra.mxu0 %v1425
    %1944 = vmatprep.subr.bf16.mxu0 0
    %1945 = vmatpush1.bf16.msra.mxu0 %v1426
    %1946 = vmatprep.subr.bf16.mxu0 0
    %1947 = vmatpush1.bf16.msra.mxu0 %v1427
    %1948 = vmatprep.subr.bf16.mxu0 0
    %1949 = vmatpush1.bf16.msra.mxu0 %v1428
    %1950 = vmatprep.subr.bf16.mxu0 0
    %1951 = vmatpush1.bf16.msra.mxu0 %v1429
    %1952 = vmatprep.subr.bf16.mxu0 0
    %1953 = vmatpush1.bf16.msra.mxu0 %v1430
    %1954 = vmatprep.subr.bf16.mxu0 0
    %1955 = vmatpush1.bf16.msra.mxu0 %v1431
    %1956 = vmatprep.subr.bf16.mxu0 0
    %1957 = vmatpush1.bf16.msra.mxu0 %v1432
    %1958 = vmatprep.mubr.bf16.mxu0 %v532
    %1959 = vmatmul.mubr.bf16.gmra.mrb[0].mxu0 %v531
    %v1960 = vpop.f32.mrb[0].mxu0
    %v1961 = vadd.f32 %v1920, %v1960
    %v1962 = vpop.f32.mrb[0].mxu0
    %v1963 = vpop.f32.mrb[0].mxu0
    %v1964 = vadd.f32 %v1923, %v1963
    %v1965 = vpop.f32.mrb[0].mxu0
    %1966 = vdwg.mxu0
    %1967 = vmatprep.subr.bf16.mxu0 0
    %1968 = vmatpush1.bf16.msra.mxu0 %v1433
    %1969 = vmatprep.subr.bf16.mxu0 0
    %1970 = vmatpush1.bf16.msra.mxu0 %v1434
    %1971 = vmatprep.subr.bf16.mxu0 0
    %1972 = vmatpush1.bf16.msra.mxu0 %v1435
    %1973 = vmatprep.subr.bf16.mxu0 0
    %1974 = vmatpush1.bf16.msra.mxu0 %v1436
    %1975 = vmatprep.subr.bf16.mxu0 0
    %1976 = vmatpush1.bf16.msra.mxu0 %v1437
    %1977 = vmatprep.subr.bf16.mxu0 0
    %1978 = vmatpush1.bf16.msra.mxu0 %v1438
    %1979 = vmatprep.subr.bf16.mxu0 0
    %1980 = vmatpush1.bf16.msra.mxu0 %v1439
    %1981 = vmatprep.subr.bf16.mxu0 0
    %1982 = vmatpush1.bf16.msra.mxu0 %v1440
    %1983 = vmatprep.subr.bf16.mxu0 0
    %1984 = vmatpush1.bf16.msra.mxu0 %v1441
    %1985 = vmatprep.subr.bf16.mxu0 0
    %1986 = vmatpush1.bf16.msra.mxu0 %v1442
    %1987 = vmatprep.subr.bf16.mxu0 0
    %1988 = vmatpush1.bf16.msra.mxu0 %v1443
    %1989 = vmatprep.subr.bf16.mxu0 0
    %1990 = vmatpush1.bf16.msra.mxu0 %v1444
    %1991 = vmatprep.subr.bf16.mxu0 0
    %1992 = vmatpush1.bf16.msra.mxu0 %v1445
    %1993 = vmatprep.subr.bf16.mxu0 0
    %1994 = vmatpush1.bf16.msra.mxu0 %v1446
    %1995 = vmatprep.subr.bf16.mxu0 0
    %1996 = vmatpush1.bf16.msra.mxu0 %v1447
    %1997 = vmatprep.subr.bf16.mxu0 0
    %1998 = vmatpush1.bf16.msra.mxu0 %v1448
    %1999 = vmatprep.mubr.bf16.mxu0 %v534
    %2000 = vmatmul.mubr.bf16.gmra.mrb[0].mxu0 %v533
    %v2001 = vpop.f32.mrb[0].mxu0
    %v2002 = vadd.f32 %v1961, %v2001
    %v2003 = vpop.f32.mrb[0].mxu0
    %v2004 = vpop.f32.mrb[0].mxu0
    %v2005 = vadd.f32 %v1964, %v2004
    %v2006 = vpop.f32.mrb[0].mxu0
    %2007 = vdwg.mxu0
    %2008 = vmatprep.subr.bf16.mxu0 0
    %2009 = vmatpush1.bf16.msra.mxu0 %v1449
    %2010 = vmatprep.subr.bf16.mxu0 0
    %2011 = vmatpush1.bf16.msra.mxu0 %v1450
    %2012 = vmatprep.subr.bf16.mxu0 0
    %2013 = vmatpush1.bf16.msra.mxu0 %v1451
    %2014 = vmatprep.subr.bf16.mxu0 0
    %2015 = vmatpush1.bf16.msra.mxu0 %v1452
    %2016 = vmatprep.subr.bf16.mxu0 0
    %2017 = vmatpush1.bf16.msra.mxu0 %v1453
    %2018 = vmatprep.subr.bf16.mxu0 0
    %2019 = vmatpush1.bf16.msra.mxu0 %v1454
    %2020 = vmatprep.subr.bf16.mxu0 0
    %2021 = vmatpush1.bf16.msra.mxu0 %v1455
    %2022 = vmatprep.subr.bf16.mxu0 0
    %2023 = vmatpush1.bf16.msra.mxu0 %v1456
    %2024 = vmatprep.subr.bf16.mxu0 0
    %2025 = vmatpush1.bf16.msra.mxu0 %v1457
    %2026 = vmatprep.subr.bf16.mxu0 0
    %2027 = vmatpush1.bf16.msra.mxu0 %v1458
    %2028 = vmatprep.subr.bf16.mxu0 0
    %2029 = vmatpush1.bf16.msra.mxu0 %v1459
    %2030 = vmatprep.subr.bf16.mxu0 0
    %2031 = vmatpush1.bf16.msra.mxu0 %v1460
    %2032 = vmatprep.subr.bf16.mxu0 0
    %2033 = vmatpush1.bf16.msra.mxu0 %v1461
    %2034 = vmatprep.subr.bf16.mxu0 0
    %2035 = vmatpush1.bf16.msra.mxu0 %v1462
    %2036 = vmatprep.subr.bf16.mxu0 0
    %2037 = vmatpush1.bf16.msra.mxu0 %v1463
    %2038 = vmatprep.subr.bf16.mxu0 0
    %2039 = vmatpush1.bf16.msra.mxu0 %v1464
    %2040 = vmatprep.mubr.bf16.mxu0 %v536
    %2041 = vmatmul.mubr.bf16.gmra.mrb[0].mxu0 %v535
    %v2042 = vpop.f32.mrb[0].mxu0
    %v2043 = vadd.f32 %v2002, %v2042
    %v2044 = vpop.f32.mrb[0].mxu0
    %v2045 = vpop.f32.mrb[0].mxu0
    %v2046 = vadd.f32 %v2005, %v2045
    %v2047 = vpop.f32.mrb[0].mxu0
    %2048 = vdwg.mxu0
    %2049 = vmatprep.subr.bf16.mxu0 0
    %2050 = vmatpush1.bf16.msra.mxu0 %v1465
    %2051 = vmatprep.subr.bf16.mxu0 0
    %2052 = vmatpush1.bf16.msra.mxu0 %v1466
    %2053 = vmatprep.subr.bf16.mxu0 0
    %2054 = vmatpush1.bf16.msra.mxu0 %v1467
    %2055 = vmatprep.subr.bf16.mxu0 0
    %2056 = vmatpush1.bf16.msra.mxu0 %v1468
    %2057 = vmatprep.subr.bf16.mxu0 0
    %2058 = vmatpush1.bf16.msra.mxu0 %v1469
    %2059 = vmatprep.subr.bf16.mxu0 0
    %2060 = vmatpush1.bf16.msra.mxu0 %v1470
    %2061 = vmatprep.subr.bf16.mxu0 0
    %2062 = vmatpush1.bf16.msra.mxu0 %v1471
    %2063 = vmatprep.subr.bf16.mxu0 0
    %2064 = vmatpush1.bf16.msra.mxu0 %v1472
    %2065 = vmatprep.subr.bf16.mxu0 0
    %2066 = vmatpush1.bf16.msra.mxu0 %v1473
    %2067 = vmatprep.subr.bf16.mxu0 0
    %2068 = vmatpush1.bf16.msra.mxu0 %v1474
    %2069 = vmatprep.subr.bf16.mxu0 0
    %2070 = vmatpush1.bf16.msra.mxu0 %v1475
    %2071 = vmatprep.subr.bf16.mxu0 0
    %2072 = vmatpush1.bf16.msra.mxu0 %v1476
    %2073 = vmatprep.subr.bf16.mxu0 0
    %2074 = vmatpush1.bf16.msra.mxu0 %v1477
    %2075 = vmatprep.subr.bf16.mxu0 0
    %2076 = vmatpush1.bf16.msra.mxu0 %v1478
    %2077 = vmatprep.subr.bf16.mxu0 0
    %2078 = vmatpush1.bf16.msra.mxu0 %v1479
    %2079 = vmatprep.subr.bf16.mxu0 0
    %2080 = vmatpush1.bf16.msra.mxu0 %v1480
    %2081 = vmatprep.mubr.bf16.mxu0 %v538
    %2082 = vmatmul.mubr.bf16.gmra.mrb[0].mxu0 %v537
    %v2083 = vpop.f32.mrb[0].mxu0
    %v2084 = vadd.f32 %v2043, %v2083
    %v2085 = vpop.f32.mrb[0].mxu0
    %v2086 = vpop.f32.mrb[0].mxu0
    %v2087 = vadd.f32 %v2046, %v2086
    %v2088 = vpop.f32.mrb[0].mxu0
    %2089 = vdwg.mxu0
    %2090 = vmatprep.subr.bf16.mxu0 0
    %2091 = vmatpush1.bf16.msra.mxu0 %v1481
    %2092 = vmatprep.subr.bf16.mxu0 0
    %2093 = vmatpush1.bf16.msra.mxu0 %v1482
    %2094 = vmatprep.subr.bf16.mxu0 0
    %2095 = vmatpush1.bf16.msra.mxu0 %v1483
    %2096 = vmatprep.subr.bf16.mxu0 0
    %2097 = vmatpush1.bf16.msra.mxu0 %v1484
    %2098 = vmatprep.subr.bf16.mxu0 0
    %2099 = vmatpush1.bf16.msra.mxu0 %v1485
    %2100 = vmatprep.subr.bf16.mxu0 0
    %2101 = vmatpush1.bf16.msra.mxu0 %v1486
    %2102 = vmatprep.subr.bf16.mxu0 0
    %2103 = vmatpush1.bf16.msra.mxu0 %v1487
    %2104 = vmatprep.subr.bf16.mxu0 0
    %2105 = vmatpush1.bf16.msra.mxu0 %v1488
    %2106 = vmatprep.subr.bf16.mxu0 0
    %2107 = vmatpush1.bf16.msra.mxu0 %v1489
    %2108 = vmatprep.subr.bf16.mxu0 0
    %2109 = vmatpush1.bf16.msra.mxu0 %v1490
    %2110 = vmatprep.subr.bf16.mxu0 0
    %2111 = vmatpush1.bf16.msra.mxu0 %v1491
    %2112 = vmatprep.subr.bf16.mxu0 0
    %2113 = vmatpush1.bf16.msra.mxu0 %v1492
    %2114 = vmatprep.subr.bf16.mxu0 0
    %2115 = vmatpush1.bf16.msra.mxu0 %v1493
    %2116 = vmatprep.subr.bf16.mxu0 0
    %2117 = vmatpush1.bf16.msra.mxu0 %v1494
    %2118 = vmatprep.subr.bf16.mxu0 0
    %2119 = vmatpush1.bf16.msra.mxu0 %v1495
    %2120 = vmatprep.subr.bf16.mxu0 0
    %2121 = vmatpush1.bf16.msra.mxu0 %v1496
    %2122 = vmatprep.mubr.bf16.mxu0 %v540
    %2123 = vmatmul.mubr.bf16.gmra.mrb[0].mxu0 %v539
    %v2124 = vpop.f32.mrb[0].mxu0
    %v2125 = vadd.f32 %v2084, %v2124
    %v2126 = vpop.f32.mrb[0].mxu0
    %v2127 = vpop.f32.mrb[0].mxu0
    %v2128 = vadd.f32 %v2087, %v2127
    %v2129 = vpop.f32.mrb[0].mxu0
    %2130 = vdwg.mxu0
    %2131 = vmatprep.subr.bf16.mxu0 0
    %2132 = vmatpush1.bf16.msra.mxu0 %v1497
    %2133 = vmatprep.subr.bf16.mxu0 0
    %2134 = vmatpush1.bf16.msra.mxu0 %v1498
    %2135 = vmatprep.subr.bf16.mxu0 0
    %2136 = vmatpush1.bf16.msra.mxu0 %v1499
    %2137 = vmatprep.subr.bf16.mxu0 0
    %2138 = vmatpush1.bf16.msra.mxu0 %v1500
    %2139 = vmatprep.subr.bf16.mxu0 0
    %2140 = vmatpush1.bf16.msra.mxu0 %v1501
    %2141 = vmatprep.subr.bf16.mxu0 0
    %2142 = vmatpush1.bf16.msra.mxu0 %v1502
    %2143 = vmatprep.subr.bf16.mxu0 0
    %2144 = vmatpush1.bf16.msra.mxu0 %v1503
    %2145 = vmatprep.subr.bf16.mxu0 0
    %2146 = vmatpush1.bf16.msra.mxu0 %v1504
    %2147 = vmatprep.subr.bf16.mxu0 0
    %2148 = vmatpush1.bf16.msra.mxu0 %v1505
    %2149 = vmatprep.subr.bf16.mxu0 0
    %2150 = vmatpush1.bf16.msra.mxu0 %v1506
    %2151 = vmatprep.subr.bf16.mxu0 0
    %2152 = vmatpush1.bf16.msra.mxu0 %v1507
    %2153 = vmatprep.subr.bf16.mxu0 0
    %2154 = vmatpush1.bf16.msra.mxu0 %v1508
    %2155 = vmatprep.subr.bf16.mxu0 0
    %2156 = vmatpush1.bf16.msra.mxu0 %v1509
    %2157 = vmatprep.subr.bf16.mxu0 0
    %2158 = vmatpush1.bf16.msra.mxu0 %v1510
    %2159 = vmatprep.subr.bf16.mxu0 0
    %2160 = vmatpush1.bf16.msra.mxu0 %v1511
    %2161 = vmatprep.subr.bf16.mxu0 0
    %2162 = vmatpush1.bf16.msra.mxu0 %v1512
    %2163 = vmatprep.mubr.bf16.mxu0 %v542
    %2164 = vmatmul.mubr.bf16.gmra.mrb[0].mxu0 %v541
    %v2165 = vpop.f32.mrb[0].mxu0
    %v2166 = vadd.f32 %v2125, %v2165
    %v2167 = vpop.f32.mrb[0].mxu0
    %v2168 = vpop.f32.mrb[0].mxu0
    %v2169 = vadd.f32 %v2128, %v2168
    %v2170 = vpop.f32.mrb[0].mxu0
    %2171 = vdwg.mxu0
    %2172 = vmatprep.subr.bf16.mxu0 0
    %2173 = vmatpush1.bf16.msra.mxu0 %v1513
    %2174 = vmatprep.subr.bf16.mxu0 0
    %2175 = vmatpush1.bf16.msra.mxu0 %v1514
    %2176 = vmatprep.subr.bf16.mxu0 0
    %2177 = vmatpush1.bf16.msra.mxu0 %v1515
    %2178 = vmatprep.subr.bf16.mxu0 0
    %2179 = vmatpush1.bf16.msra.mxu0 %v1516
    %2180 = vmatprep.subr.bf16.mxu0 0
    %2181 = vmatpush1.bf16.msra.mxu0 %v1517
    %2182 = vmatprep.subr.bf16.mxu0 0
    %2183 = vmatpush1.bf16.msra.mxu0 %v1518
    %2184 = vmatprep.subr.bf16.mxu0 0
    %2185 = vmatpush1.bf16.msra.mxu0 %v1519
    %2186 = vmatprep.subr.bf16.mxu0 0
    %2187 = vmatpush1.bf16.msra.mxu0 %v1520
    %2188 = vmatprep.subr.bf16.mxu0 0
    %2189 = vmatpush1.bf16.msra.mxu0 %v1521
    %2190 = vmatprep.subr.bf16.mxu0 0
    %2191 = vmatpush1.bf16.msra.mxu0 %v1522
    %2192 = vmatprep.subr.bf16.mxu0 0
    %2193 = vmatpush1.bf16.msra.mxu0 %v1523
    %2194 = vmatprep.subr.bf16.mxu0 0
    %2195 = vmatpush1.bf16.msra.mxu0 %v1524
    %2196 = vmatprep.subr.bf16.mxu0 0
    %2197 = vmatpush1.bf16.msra.mxu0 %v1525
    %2198 = vmatprep.subr.bf16.mxu0 0
    %2199 = vmatpush1.bf16.msra.mxu0 %v1526
    %2200 = vmatprep.subr.bf16.mxu0 0
    %2201 = vmatpush1.bf16.msra.mxu0 %v1527
    %2202 = vmatprep.subr.bf16.mxu0 0
    %2203 = vmatpush1.bf16.msra.mxu0 %v1528
    %2204 = vmatprep.mubr.bf16.mxu0 %v544
    %2205 = vmatmul.mubr.bf16.gmra.mrb[0].mxu0 %v543
    %v2206 = vpop.f32.mrb[0].mxu0
    %v2207 = vadd.f32 %v2166, %v2206
    %v2208 = vpop.f32.mrb[0].mxu0
    %v2209 = vpop.f32.mrb[0].mxu0
    %v2210 = vadd.f32 %v2169, %v2209
    %v2211 = vpop.f32.mrb[0].mxu0
    %2212 = vdwg.mxu0
    %v2213 = vmax.f32 %v2207, 0.0
    %v2214 = vmax.f32 %v2210, 0.0
    %v2215 = vpack.c.bf16 %v2214, %v2213
    %v2216 = vld [vmem:[%s3] sm:$0xf]
    %v2217 = vld [vmem:[%s3 + $0x4] sm:$0xf]
    %v2218 = vld [vmem:[%s3 + $0x8] sm:$0xf]
    %v2219 = vld [vmem:[%s3 + $0xc] sm:$0xf]
    %v2220 = vld [vmem:[%s3 + $0x10] sm:$0xf]
    %v2221 = vld [vmem:[%s3 + $0x14] sm:$0xf]
    %v2222 = vld [vmem:[%s3 + $0x18] sm:$0xf]
    %v2223 = vld [vmem:[%s3 + $0x1c] sm:$0xf]
    %v2224 = vld [vmem:[%s4] sm:$0x1]
    %v2226 = vlaneseq
    %v2227 = vshrl.u32 %v2226, 7
    %v2228 = vsub.s32 0, %v2227
    %v2229 = vrot.slane %v2224, %v2228
    %v2239 = vunpack.c.l.b16 %v2216
    %v2240 = vunpack.c.l.b16 %v2217
    %v2241 = vunpack.c.l.b16 %v2218
    %v2242 = vunpack.c.l.b16 %v2219
    %v2243 = vunpack.c.l.b16 %v2220
    %v2244 = vunpack.c.l.b16 %v2221
    %v2245 = vunpack.c.l.b16 %v2222
    %v2246 = vunpack.c.l.b16 %v2223
    %v2247 = vpack.c.b16 %v2240, %v2239
    %v2248 = vpack.c.b16 %v2242, %v2241
    %v2249 = vpack.c.b16 %v2244, %v2243
    %v2250 = vpack.c.b16 %v2246, %v2245
    %vm2255 = vcmask 523264
    %v2257 = vsel %vm2255, %v2215, 0
    %2259 = vmatprep.subr.bf16.mxu0 0
    %2260 = vmatpush1.bf16.msra.mxu0 %v2247
    %2261 = vmatprep.subr.bf16.mxu0 0
    %2262 = vmatpush1.bf16.msra.mxu0 %v2248
    %2263 = vmatprep.subr.bf16.mxu0 0
    %2264 = vmatpush1.bf16.msra.mxu0 %v2249
    %2265 = vmatprep.subr.bf16.mxu0 0
    %2266 = vmatpush1.bf16.msra.mxu0 %v2250
    %2267 = vmatprep.subr.bf16.mxu0 0
    %2268 = vmatpush1.bf16.msra.mxu0 0
    %2269 = vmatprep.subr.bf16.mxu0 0
    %2270 = vmatpush1.bf16.msra.mxu0 0
    %2271 = vmatprep.subr.bf16.mxu0 0
    %2272 = vmatpush1.bf16.msra.mxu0 0
    %2273 = vmatprep.subr.bf16.mxu0 0
    %2274 = vmatpush1.bf16.msra.mxu0 0
    %2275 = vmatprep.subr.bf16.mxu0 0
    %2276 = vmatpush1.bf16.msra.mxu0 0
    %2277 = vmatprep.subr.bf16.mxu0 0
    %2278 = vmatpush1.bf16.msra.mxu0 0
    %2279 = vmatprep.subr.bf16.mxu0 0
    %2280 = vmatpush1.bf16.msra.mxu0 0
    %2281 = vmatprep.subr.bf16.mxu0 0
    %2282 = vmatpush1.bf16.msra.mxu0 0
    %2283 = vmatprep.subr.bf16.mxu0 0
    %2284 = vmatpush1.bf16.msra.mxu0 0
    %2285 = vmatprep.subr.bf16.mxu0 0
    %2286 = vmatpush1.bf16.msra.mxu0 0
    %2287 = vmatprep.subr.bf16.mxu0 0
    %2288 = vmatpush1.bf16.msra.mxu0 0
    %2289 = vmatprep.subr.bf16.mxu0 0
    %2290 = vmatpush1.bf16.msra.mxu0 0
    %2291 = vmatprep.mubr.bf16.mxu0 0
    %2292 = vmatmul.mubr.bf16.gmra.mrb[0].mxu0 %v2257
    %v2293 = vpop.f32.mrb[0].mxu0
    %v2294 = vadd.f32 %v2229, %v2293
    %v2295 = vpop.f32.mrb[0].mxu0
    %v2296 = vpop.f32.mrb[0].mxu0
    %v2297 = vadd.f32 %v2229, %v2296
    %v2298 = vpop.f32.mrb[0].mxu0
    %2299 = vdwg.mxu0
    %v2300 = vmax.f32 %v2294, 0.0
    %v2301 = vmax.f32 %v2297, 0.0
    %v2302 = vpack.c.bf16 %v2301, %v2300
    %v2303 = vld [vmem:[%s5] sm:$0xf]
    %v2304 = vld [vmem:[%s5 + $0x4] sm:$0xf]
    %v2305 = vld [vmem:[%s5 + $0x8] sm:$0xf]
    %v2306 = vld [vmem:[%s5 + $0xc] sm:$0xf]
    %v2307 = vld [vmem:[%s6] sm:$0x1]
    %v2309 = vlaneseq
    %v2310 = vshrl.u32 %v2309, 7
    %v2311 = vsub.s32 0, %v2310
    %v2312 = vrot.slane %v2307, %v2311
    %v2318 = vunpack.c.l.b16 %v2303
    %v2319 = vunpack.c.l.b16 %v2304
    %v2320 = vunpack.c.l.b16 %v2305
    %v2321 = vunpack.c.l.b16 %v2306
    %v2322 = vpack.c.b16 %v2319, %v2318
    %v2323 = vpack.c.b16 %v2321, %v2320
    %vm2326 = vcmask 261120
    %v2328 = vsel %vm2326, %v2302, 0
    %2330 = vmatprep.subr.bf16.mxu0 0
    %2331 = vmatpush1.bf16.msra.mxu0 %v2322
    %2332 = vmatprep.subr.bf16.mxu0 0
    %2333 = vmatpush1.bf16.msra.mxu0 %v2323
    %2334 = vmatprep.subr.bf16.mxu0 0
    %2335 = vmatpush1.bf16.msra.mxu0 0
    %2336 = vmatprep.subr.bf16.mxu0 0
    %2337 = vmatpush1.bf16.msra.mxu0 0
    %2338 = vmatprep.subr.bf16.mxu0 0
    %2339 = vmatpush1.bf16.msra.mxu0 0
    %2340 = vmatprep.subr.bf16.mxu0 0
    %2341 = vmatpush1.bf16.msra.mxu0 0
    %2342 = vmatprep.subr.bf16.mxu0 0
    %2343 = vmatpush1.bf16.msra.mxu0 0
    %2344 = vmatprep.subr.bf16.mxu0 0
    %2345 = vmatpush1.bf16.msra.mxu0 0
    %2346 = vmatprep.subr.bf16.mxu0 0
    %2347 = vmatpush1.bf16.msra.mxu0 0
    %2348 = vmatprep.subr.bf16.mxu0 0
    %2349 = vmatpush1.bf16.msra.mxu0 0
    %2350 = vmatprep.subr.bf16.mxu0 0
    %2351 = vmatpush1.bf16.msra.mxu0 0
    %2352 = vmatprep.subr.bf16.mxu0 0
    %2353 = vmatpush1.bf16.msra.mxu0 0
    %2354 = vmatprep.subr.bf16.mxu0 0
    %2355 = vmatpush1.bf16.msra.mxu0 0
    %2356 = vmatprep.subr.bf16.mxu0 0
    %2357 = vmatpush1.bf16.msra.mxu0 0
    %2358 = vmatprep.subr.bf16.mxu0 0
    %2359 = vmatpush1.bf16.msra.mxu0 0
    %2360 = vmatprep.subr.bf16.mxu0 0
    %2361 = vmatpush1.bf16.msra.mxu0 0
    %2362 = vmatprep.mubr.bf16.mxu0 0
    %2363 = vmatmul.mubr.bf16.gmra.mrb[0].mxu0 %v2328
    %v2364 = vpop.f32.mrb[0].mxu0
    %v2365 = vadd.f32 %v2312, %v2364
    %v2366 = vpop.f32.mrb[0].mxu0
    %v2367 = vpop.f32.mrb[0].mxu0
    %v2368 = vadd.f32 %v2312, %v2367
    %v2369 = vpop.f32.mrb[0].mxu0
    %2370 = vdwg.mxu0
    %v2371 = vmax.f32 %v2365, 0.0
    %v2372 = vmax.f32 %v2368, 0.0
    %v2373 = vpack.c.bf16 %v2372, %v2371
    %v2374 = vld [vmem:[%s7] sm:$0xf]
    %v2375 = vld [vmem:[%s7 + $0x4] sm:$0xf]
    %v2376 = vld [vmem:[%s8] sm:$0x1]
    %v2378 = vlaneseq
    %v2379 = vshrl.u32 %v2378, 7
    %v2380 = vsub.s32 0, %v2379
    %v2381 = vrot.slane %v2376, %v2380
    %v2385 = vunpack.c.l.b16 %v2374
    %v2386 = vunpack.c.l.b16 %v2375
    %v2387 = vpack.c.b16 %v2386, %v2385
    %vm2389 = vcmask 130048
    %v2391 = vsel %vm2389, %v2373, 0
    %2393 = vmatprep.subr.bf16.mxu0 0
    %2394 = vmatpush1.bf16.msra.mxu0 %v2387
    %2395 = vmatprep.subr.bf16.mxu0 0
    %2396 = vmatpush1.bf16.msra.mxu0 0
    %2397 = vmatprep.subr.bf16.mxu0 0
    %2398 = vmatpush1.bf16.msra.mxu0 0
    %2399 = vmatprep.subr.bf16.mxu0 0
    %2400 = vmatpush1.bf16.msra.mxu0 0
    %2401 = vmatprep.subr.bf16.mxu0 0
    %2402 = vmatpush1.bf16.msra.mxu0 0
    %2403 = vmatprep.subr.bf16.mxu0 0
    %2404 = vmatpush1.bf16.msra.mxu0 0
    %2405 = vmatprep.subr.bf16.mxu0 0
    %2406 = vmatpush1.bf16.msra.mxu0 0
    %2407 = vmatprep.subr.bf16.mxu0 0
    %2408 = vmatpush1.bf16.msra.mxu0 0
    %2409 = vmatprep.subr.bf16.mxu0 0
    %2410 = vmatpush1.bf16.msra.mxu0 0
    %2411 = vmatprep.subr.bf16.mxu0 0
    %2412 = vmatpush1.bf16.msra.mxu0 0
    %2413 = vmatprep.subr.bf16.mxu0 0
    %2414 = vmatpush1.bf16.msra.mxu0 0
    %2415 = vmatprep.subr.bf16.mxu0 0
    %2416 = vmatpush1.bf16.msra.mxu0 0
    %2417 = vmatprep.subr.bf16.mxu0 0
    %2418 = vmatpush1.bf16.msra.mxu0 0
    %2419 = vmatprep.subr.bf16.mxu0 0
    %2420 = vmatpush1.bf16.msra.mxu0 0
    %2421 = vmatprep.subr.bf16.mxu0 0
    %2422 = vmatpush1.bf16.msra.mxu0 0
    %2423 = vmatprep.subr.bf16.mxu0 0
    %2424 = vmatpush1.bf16.msra.mxu0 0
    %2425 = vmatprep.mubr.bf16.mxu0 0
    %2426 = vmatmul.mubr.bf16.gmra.mrb[0].mxu0 %v2391
    %v2427 = vpop.f32.mrb[0].mxu0
    %v2428 = vadd.f32 %v2381, %v2427
    %v2429 = vpop.f32.mrb[0].mxu0
    %v2430 = vpop.f32.mrb[0].mxu0
    %v2431 = vadd.f32 %v2381, %v2430
    %v2432 = vpop.f32.mrb[0].mxu0
    %2433 = vdwg.mxu0
    %vm2434 = vcmask 80896
    %2435 = vst.msk [vmem:[#allocation2] sm:$0xff] %vm2434, %v2428
    %2436 = vst.msk [vmem:[#allocation2 + $0x8] sm:$0xff] %vm2434, %v2431
    // Predicated region
    $region38: #{tpu_custom_call.1} parent=1 // pred_check
      _
    $region39: #{tpu_custom_call.1} parent=1 // pred_check_branch
      %2438 = sbr.rel (0) target = $region41
    $region40: #{tpu_custom_call.1} parent=1 // pred_region
      %s2440 = ssub.s32 256, 256
      %2441 = vsyncadd [#allocation3], %s2440
      %s2442 = sshll.u32 [#allocation2], 4
      %s2443 = int_to_ptr.vmem [resolvable:$true] %s2442
      %2448 = dma.vmem_to_hbm [thread:$0]  %s2443, 256, %s9, [#allocation3], 128, 128, 8
    $region41: #{tpu_custom_call.1} parent=1 // pred_fallthru
      _
    // Predicated region
    $region42: #{tpu_custom_call.1} parent=1 // pred_check
      _
    $region43: #{tpu_custom_call.1} parent=1 // pred_check_branch
      %2450 = sbr.rel (0) target = $region45
    $region44: #{tpu_custom_call.1} parent=1 // pred_region
      %2451 = dma.done [#allocation3], 256
    $region45: #{tpu_custom_call.1} parent=1 // pred_fallthru
      _
    %2452 = vsyncpa [#allocation3], 1

</llo_original>
